<compile_context>
chip_gen: v7x
topology: tpu7x:2x2x1
jax: 0.10.0
libtpu: 0.0.40
codegen_flags: <defaults>
</compile_context>

<pallas_src>
import math
import functools

import jax
import jax.numpy as jnp
from jax import lax
from jax.experimental import pallas as pl
from jax.experimental.pallas import tpu as pltpu

LN_EPS = 1e-5  # torch.nn.LayerNorm default

_USE_NATIVE_ERF = None     # resolved lazily (probe)
_USE_SINGLE_BUFFER = None  # resolved lazily (probe)


# ----------------------------- in-kernel helpers -----------------------------

def _layernorm(x, gamma, beta):
    # x: (R, C), gamma/beta: (1, C). Biased variance, like torch LayerNorm.
    mean = jnp.mean(x, axis=-1, keepdims=True)
    var = jnp.mean((x - mean) ** 2, axis=-1, keepdims=True)
    return (x - mean) * lax.rsqrt(var + LN_EPS) * gamma + beta


def _erf_poly(x):
    # Abramowitz & Stegun 7.1.26, |err| < 1.5e-7 (exact at float32).
    p = 0.3275911
    a1, a2, a3, a4, a5 = (0.254829592, -0.284496736, 1.421413741,
                          -1.453152027, 1.061405429)
    sign = jnp.where(x >= 0.0, 1.0, -1.0)
    ax = jnp.abs(x)
    t = 1.0 / (1.0 + p * ax)
    poly = ((((a5 * t + a4) * t + a3) * t + a2) * t + a1) * t
    return sign * (1.0 - poly * jnp.exp(-ax * ax))


def _gelu_exact(x):
    # torch.nn.GELU() default (erf-based).
    z = x * (1.0 / math.sqrt(2.0))
    erf_z = lax.erf(z) if _USE_NATIVE_ERF else _erf_poly(z)
    return 0.5 * x * (1.0 + erf_z)


# ------------------------------- capability probes ---------------------------

def _probe_native_erf():
    """True iff lax.erf lowers inside a Pallas TPU kernel on this backend."""
    def k(x_ref, o_ref):
        o_ref[...] = lax.erf(x_ref[...])
    try:
        out = pl.pallas_call(
            k, out_shape=jax.ShapeDtypeStruct((8, 128), jnp.float32),
        )(jnp.zeros((8, 128), jnp.float32))
        jax.block_until_ready(out)
        return True
    except Exception:
        return False


def _probe_single_buffer():
    """True iff pipeline_mode=pl.Buffered(1) (single-buffered constant input)
    is supported by this Pallas/Mosaic version."""
    def k(x_ref, o_ref):
        o_ref[...] = x_ref[...]
    try:
        out = pl.pallas_call(
            k,
            out_shape=jax.ShapeDtypeStruct((16, 128), jnp.float32),
            grid=(2,),
            in_specs=[pl.BlockSpec((8, 128), lambda i: (0, 0),
                                   pipeline_mode=pl.Buffered(1))],
            out_specs=pl.BlockSpec((8, 128), lambda i: (i, 0)),
        )(jnp.ones((8, 128), jnp.float32))
        jax.block_until_ready(out)
        return True
    except Exception:
        return False


def _vmem_limit_bytes():
    """~3/4 of physical VMEM, capped at 100 MiB (v5e/v6e: ~96 MiB, v7x: ~48 MiB)."""
    try:
        cap = int(pltpu.get_tpu_info().vmem_capacity_bytes)
        if cap <= 0:
            raise ValueError
    except Exception:
        cap = 64 * 1024 * 1024  # conservative fallback (v7x per-core VMEM)
    return min((cap * 3) // 4, 100 * 1024 * 1024)


# -------------------------------- fused kernel --------------------------------

def block_kernel(x_ref, g1_ref, b1_ref, wq_ref, wkv_ref, wproj_ref, bproj_ref,
                 g2_ref, b2_ref, w1_ref, b1m_ref, w2_ref, b2m_ref,
                 o_ref, attn_scr, *, num_heads, head_dim, tq):
    """One (batch, q-row-tile) grid step, both stages fused:
         x1 = x_q + Proj(MHSA(LN1(x))_q);  o = x1 + fc2(GELU(fc1(LN2(x1))))."""
    f32 = jnp.float32
    bf16 = jnp.bfloat16
    C = num_heads * head_dim

    q_start = pl.multiple_of(pl.program_id(1) * tq, tq)

    x_full = x_ref[0]                                    # (N, C) f32 (for K/V)
    x_q = x_ref[0, pl.ds(q_start, tq), :]                # (tq, C) f32 tile rows

    # ---------------- attention stage ----------------
    xn_full = _layernorm(x_full, g1_ref[...], b1_ref[...])
    # LayerNorm is row-wise, so LN(x)[tile] == LN(x[tile]); cheap recompute
    # avoids a dynamic sublane slice of a large value.
    xn_q = _layernorm(x_q, g1_ref[...], b1_ref[...])

    # Q only for the tile rows (scale already folded into w_q); K/V for all rows.
    q = jnp.dot(xn_q.astype(bf16), wq_ref[...],
                preferred_element_type=f32).astype(bf16)      # (tq, C)
    kv = jnp.dot(xn_full.astype(bf16), wkv_ref[...],
                 preferred_element_type=f32).astype(bf16)     # (N, 2C)

    # Static head loop; each iteration ends in a scratch store (bounded liveness).
    # NOTE: q@k^T contracts the last dims directly (no per-head XLU transpose).
    for h in range(num_heads):
        lo = h * head_dim
        hi = lo + head_dim
        q_h = q[:, lo:hi]                                     # (tq, hd) bf16
        k_h = kv[:, lo:hi]                                    # (N,  hd) bf16
        v_h = kv[:, C + lo:C + hi]                            # (N,  hd) bf16

        s = lax.dot_general(q_h, k_h, (((1,), (1,)), ((), ())),
                            preferred_element_type=f32)       # (tq, N)
        s = s - jnp.max(s, axis=-1, keepdims=True)
        p = jnp.exp(s)
        p = p * pl.reciprocal(jnp.sum(p, axis=-1, keepdims=True), approx=True)

        hv = jnp.dot(p.astype(bf16), v_h,
                     preferred_element_type=f32)              # (tq, hd)
        attn_scr[:, lo:hi] = hv                               # static lane offset

    # Single K=C output projection (full MXU contraction depth).
    attn_out = jnp.dot(attn_scr[...].astype(bf16), wproj_ref[...],
                       preferred_element_type=f32)            # (tq, C)

    x1 = x_q + attn_out + bproj_ref[...]                      # residual 1 (VMEM)

    # ---------------- MLP stage (tile rows only) ----------------
    xn2 = _layernorm(x1, g2_ref[...], b2_ref[...])
    h1 = jnp.dot(xn2.astype(bf16), w1_ref[...],
                 preferred_element_type=f32) + b1m_ref[...]   # (tq, hidden)
    h1 = _gelu_exact(h1)
    y = jnp.dot(h1.astype(bf16), w2_ref[...],
                preferred_element_type=f32) + b2m_ref[...]    # (tq, C)

    o_ref[0] = x1 + y                                         # residual 2


# ---------------------------------- wrappers -----------------------------------

def prepare_block_params(params, *, num_heads):
    """One-time weight prep — call at model init, NOT per forward:
       split w_qkv into (scaled) w_q / w_kv and pre-cast MXU weights to bf16."""
    C = params["w_qkv"].shape[0]
    head_dim = C // num_heads
    scale = head_dim ** (-0.5)
    bf16 = jnp.bfloat16
    prep = dict(params)
    prep["w_q"] = (params["w_qkv"][:, :C] * scale).astype(bf16)   # (C, C)
    prep["w_kv"] = params["w_qkv"][:, C:].astype(bf16)            # (C, 2C)
    prep["w_proj_bf16"] = params["w_proj"].astype(bf16)           # (C, C)
    prep["w_fc1_bf16"] = params["w_fc1"].astype(bf16)             # (C, hidden)
    prep["w_fc2_bf16"] = params["w_fc2"].astype(bf16)             # (hidden, C)
    return prep


def block_forward(x, prep, *, num_heads, tq=None):
    global _USE_NATIVE_ERF, _USE_SINGLE_BUFFER
    if _USE_NATIVE_ERF is None:
        _USE_NATIVE_ERF = _probe_native_erf()
    if _USE_SINGLE_BUFFER is None:
        _USE_SINGLE_BUFFER = _probe_single_buffer()

    B, N, C = x.shape
    head_dim = C // num_heads
    hidden = prep["w_fc1_bf16"].shape[1]

    if tq is None:
        tq = 256 if (N % 256 == 0) else N
    assert N % tq == 0, "seq length must be divisible by the q-tile size"
    num_q_tiles = N // tq

    def const_spec(shape):
        # Weights / biases / LN params never change across the grid ->
        # single-buffer them when supported (halves weight VMEM residency).
        if _USE_SINGLE_BUFFER:
            return pl.BlockSpec(shape, lambda b, t: (0, 0),
                                pipeline_mode=pl.Buffered(1))
        return pl.BlockSpec(shape, lambda b, t: (0, 0))

    kernel = functools.partial(block_kernel, num_heads=num_heads,
                               head_dim=head_dim, tq=tq)

    return pl.pallas_call(
        kernel,
        out_shape=jax.ShapeDtypeStruct((B, N, C), jnp.float32),
        grid=(B, num_q_tiles),
        in_specs=[
            pl.BlockSpec((1, N, C), lambda b, t: (b, 0, 0)),   # x (full rows, K/V)
            const_spec((1, C)), const_spec((1, C)),            # LN1 gamma / beta
            const_spec((C, C)),                                # W_q (bf16, scaled)
            const_spec((C, 2 * C)),                            # W_kv (bf16)
            const_spec((C, C)), const_spec((1, C)),            # W_proj bf16, b_proj
            const_spec((1, C)), const_spec((1, C)),            # LN2 gamma / beta
            const_spec((C, hidden)), const_spec((1, hidden)),  # fc1 W bf16, b f32
            const_spec((hidden, C)), const_spec((1, C)),       # fc2 W bf16, b f32
        ],
        out_specs=pl.BlockSpec((1, tq, C), lambda b, t: (b, t, 0)),
        scratch_shapes=[pltpu.VMEM((tq, C), jnp.float32)],     # per-head outputs
        compiler_params=pltpu.CompilerParams(
            dimension_semantics=("parallel", "parallel"),
            vmem_limit_bytes=_vmem_limit_bytes(),
        ),
    )(x, prep["g1"], prep["b1"], prep["w_q"], prep["w_kv"],
      prep["w_proj_bf16"], prep["b_proj"], prep["g2"], prep["b2"],
      prep["w_fc1_bf16"], prep["b_fc1"], prep["w_fc2_bf16"], prep["b_fc2"])


# --------------------------- pure-JAX reference --------------------------------

def block_reference(x, params, *, num_heads):
    B, N, C = x.shape
    hd = C // num_heads
    scale = hd ** (-0.5)

    def ln(v, g, b):
        m = jnp.mean(v, axis=-1, keepdims=True)
        var = jnp.mean((v - m) ** 2, axis=-1, keepdims=True)
        return (v - m) * lax.rsqrt(var + LN_EPS) * g + b

    xn = ln(x, params["g1"], params["b1"])
    qkv = xn @ params["w_qkv"]                                   # (B,N,3C)
    qkv = qkv.reshape(B, N, 3, num_heads, hd).transpose(2, 0, 3, 1, 4)
    q, k, v = qkv[0], qkv[1], qkv[2]                             # (B,H,N,hd)
    attn = jax.nn.softmax(
        jnp.einsum("bhnd,bhmd->bhnm", q * scale, k), axis=-1)
    o = jnp.einsum("bhnm,bhmd->bhnd", attn, v)
    o = o.transpose(0, 2, 1, 3).reshape(B, N, C)
    x = x + (o @ params["w_proj"] + params["b_proj"])

    xn2 = ln(x, params["g2"], params["b2"])
    h = jax.nn.gelu(xn2 @ params["w_fc1"] + params["b_fc1"], approximate=False)
    x = x + (h @ params["w_fc2"] + params["b_fc2"])
    return x


# ----------------------------------- main --------------------------------------

if __name__ == "__main__":
    B, N, C = 2, 16, 32       # batch, seq, dim (small; exercises 2 q-tiles)
    num_heads = 4
    hidden = int(C * 4.0)     # mlp_ratio = 4.0
    TQ = 8                    # q-row tile size (exercises the tiling path)

    key = jax.random.PRNGKey(0)
    ks = jax.random.split(key, 12)
    f32 = jnp.float32

    params = {
        # LayerNorm1 / LayerNorm2 (affine), kept as (1, C) rows
        "g1": 1.0 + 0.02 * jax.random.normal(ks[0], (1, C), f32),
        "b1": 0.02 * jax.random.normal(ks[1], (1, C), f32),
        "g2": 1.0 + 0.02 * jax.random.normal(ks[2], (1, C), f32),
        "b2": 0.02 * jax.random.normal(ks[3], (1, C), f32),
        # Attention: qkv (bias=False), proj (bias=True); weights stored (in, out)
        "w_qkv": 0.05 * jax.random.normal(ks[4], (C, 3 * C), f32),
        "w_proj": 0.05 * jax.random.normal(ks[5], (C, C), f32),
        "b_proj": 0.02 * jax.random.normal(ks[6], (1, C), f32),
        # Mlp: fc1 / fc2 with bias
        "w_fc1": 0.05 * jax.random.normal(ks[7], (C, hidden), f32),
        "b_fc1": 0.02 * jax.random.normal(ks[8], (1, hidden), f32),
        "w_fc2": 0.05 * jax.random.normal(ks[9], (hidden, C), f32),
        "b_fc2": 0.02 * jax.random.normal(ks[10], (1, C), f32),
    }

    x = jax.random.normal(ks[11], (B, N, C), f32)

    prep = prepare_block_params(params, num_heads=num_heads)  # init-time, once
    out = block_forward(x, prep, num_heads=num_heads, tq=TQ)
    out = jax.block_until_ready(out)

    ref = block_reference(x, params, num_heads=num_heads)
    assert out.shape == (B, N, C) and out.dtype == jnp.float32
    max_err = float(jnp.max(jnp.abs(out - ref)))
    # bf16 MXU operands (f32 accumulation) + approx reciprocal -> loosen the
    # f32-exact tolerance accordingly; observed error is O(1e-3).
    assert jnp.allclose(out, ref, rtol=2e-2, atol=2e-2), \
        f"max abs err {max_err}"

    print("KERNEL_OK")
</pallas_src>

<mosaic_0001>
module attributes {stable_mosaic.version = 11 : i64} {
  func.func @k(%arg0: memref<8x128xf32, #tpu.memory_space<vmem>>, %arg1: memref<8x128xf32, #tpu.memory_space<vmem>>) attributes {dimension_semantics = [], scalar_prefetch = 0 : i64, scratch_operands = 0 : i64, tpu.core_type = #tpu.core_type<tc>} {
    %c0 = arith.constant 0 : index
    %c0_0 = arith.constant 0 : index
    %0 = vector.load %arg0[%c0, %c0_0] : memref<8x128xf32, #tpu.memory_space<vmem>>, vector<8x128xf32>
    %1 = math.erf %0 : vector<8x128xf32>
    %c0_1 = arith.constant 0 : index
    %c0_2 = arith.constant 0 : index
    %2 = vector.load %arg1[%c0_1, %c0_2] : memref<8x128xf32, #tpu.memory_space<vmem>>, vector<8x128xf32>
    tpu.vector_store %arg1[%c0_1, %c0_2], %1 {strides = array<i32>} : memref<8x128xf32, #tpu.memory_space<vmem>>, vector<8x128xf32>,
    return
  }
}

module attributes {stable_mosaic.version = 11 : i64} {
  func.func @k(%arg0: i32, %arg1: memref<8x128xf32, #tpu.memory_space<vmem>>, %arg2: memref<8x128xf32, #tpu.memory_space<vmem>>) attributes {dimension_semantics = [#tpu.dimension_semantics<arbitrary>], iteration_bounds = array<i64: 2>, scalar_prefetch = 0 : i64, scratch_operands = 0 : i64, tpu.core_type = #tpu.core_type<tc>, window_params = [{pipeline_mode = #tpu.pipeline_mode<synchronous>, transform_indices = @transform_0, window_bounds = array<i64: 8, 128>}, {transform_indices = @transform_1, window_bounds = array<i64: 8, 128>}]} {
    %c0 = arith.constant 0 : index
    %c0_0 = arith.constant 0 : index
    %0 = vector.load %arg1[%c0, %c0_0] : memref<8x128xf32, #tpu.memory_space<vmem>>, vector<8x128xf32>
    %c0_1 = arith.constant 0 : index
    %c0_2 = arith.constant 0 : index
    %1 = vector.load %arg2[%c0_1, %c0_2] : memref<8x128xf32, #tpu.memory_space<vmem>>, vector<8x128xf32>
    tpu.vector_store %arg2[%c0_1, %c0_2], %0 {strides = array<i32>} : memref<8x128xf32, #tpu.memory_space<vmem>>, vector<8x128xf32>,
    return
  }
  func.func @transform_0(%arg0: i32) -> (i32, i32) {
    %c0_i32 = arith.constant 0 : i32
    %c0_i32_0 = arith.constant 0 : i32
    %c0_i32_1 = arith.constant 0 : i32
    return %c0_i32, %c0_i32_0 : i32, i32
  }
  func.func @transform_1(%arg0: i32) -> (i32, i32) {
    %c0_i32 = arith.constant 0 : i32
    %c0_i32_0 = arith.constant 0 : i32
    return %arg0, %c0_i32 : i32, i32
  }
}

module attributes {stable_mosaic.version = 11 : i64} {
  func.func @block_kernel(%arg0: i32, %arg1: i32, %arg2: memref<1x16x32xf32, #tpu.memory_space<vmem>>, %arg3: memref<1x32xf32, #tpu.memory_space<vmem>>, %arg4: memref<1x32xf32, #tpu.memory_space<vmem>>, %arg5: memref<32x32xbf16, #tpu.memory_space<vmem>>, %arg6: memref<32x64xbf16, #tpu.memory_space<vmem>>, %arg7: memref<32x32xbf16, #tpu.memory_space<vmem>>, %arg8: memref<1x32xf32, #tpu.memory_space<vmem>>, %arg9: memref<1x32xf32, #tpu.memory_space<vmem>>, %arg10: memref<1x32xf32, #tpu.memory_space<vmem>>, %arg11: memref<32x128xbf16, #tpu.memory_space<vmem>>, %arg12: memref<1x128xf32, #tpu.memory_space<vmem>>, %arg13: memref<128x32xbf16, #tpu.memory_space<vmem>>, %arg14: memref<1x32xf32, #tpu.memory_space<vmem>>, %arg15: memref<1x8x32xf32, #tpu.memory_space<vmem>>, %arg16: memref<8x32xf32, #tpu.memory_space<vmem>>) attributes {dimension_semantics = [#tpu.dimension_semantics<parallel>, #tpu.dimension_semantics<parallel>], iteration_bounds = array<i64: 2, 2>, scalar_prefetch = 0 : i64, scratch_operands = 1 : i64, tpu.core_type = #tpu.core_type<tc>, window_params = [{transform_indices = @transform_0, window_bounds = array<i64: 1, 16, 32>}, {pipeline_mode = #tpu.pipeline_mode<synchronous>, transform_indices = @transform_1, window_bounds = array<i64: 1, 32>}, {pipeline_mode = #tpu.pipeline_mode<synchronous>, transform_indices = @transform_2, window_bounds = array<i64: 1, 32>}, {pipeline_mode = #tpu.pipeline_mode<synchronous>, transform_indices = @transform_3, window_bounds = array<i64: 32, 32>}, {pipeline_mode = #tpu.pipeline_mode<synchronous>, transform_indices = @transform_4, window_bounds = array<i64: 32, 64>}, {pipeline_mode = #tpu.pipeline_mode<synchronous>, transform_indices = @transform_5, window_bounds = array<i64: 32, 32>}, {pipeline_mode = #tpu.pipeline_mode<synchronous>, transform_indices = @transform_6, window_bounds = array<i64: 1, 32>}, {pipeline_mode = #tpu.pipeline_mode<synchronous>, transform_indices = @transform_7, window_bounds = array<i64: 1, 32>}, {pipeline_mode = #tpu.pipeline_mode<synchronous>, transform_indices = @transform_8, window_bounds = array<i64: 1, 32>}, {pipeline_mode = #tpu.pipeline_mode<synchronous>, transform_indices = @transform_9, window_bounds = array<i64: 32, 128>}, {pipeline_mode = #tpu.pipeline_mode<synchronous>, transform_indices = @transform_10, window_bounds = array<i64: 1, 128>}, {pipeline_mode = #tpu.pipeline_mode<synchronous>, transform_indices = @transform_11, window_bounds = array<i64: 128, 32>}, {pipeline_mode = #tpu.pipeline_mode<synchronous>, transform_indices = @transform_12, window_bounds = array<i64: 1, 32>}, {transform_indices = @transform_13, window_bounds = array<i64: 1, 8, 32>}]} {
    %c8_i32 = arith.constant 8 : i32
    %0 = arith.muli %arg1, %c8_i32 : i32
    %1 = tpu.assume_multiple %0, 8 : i32
    %c0 = arith.constant 0 : index
    %c0_0 = arith.constant 0 : index
    %c0_1 = arith.constant 0 : index
    %2 = vector.load %arg2[%c0, %c0_0, %c0_1] : memref<1x16x32xf32, #tpu.memory_space<vmem>>, vector<1x16x32xf32>
    %3 = vector.shape_cast %2 : vector<1x16x32xf32> to vector<16x32xf32>
    %c0_2 = arith.constant 0 : index
    %4 = arith.index_cast %1 : i32 to index
    %c0_3 = arith.constant 0 : index
    %5 = vector.load %arg2[%c0_2, %4, %c0_3] : memref<1x16x32xf32, #tpu.memory_space<vmem>>, vector<1x8x32xf32>
    %6 = vector.shape_cast %5 : vector<1x8x32xf32> to vector<8x32xf32>
    %c0_4 = arith.constant 0 : index
    %c0_5 = arith.constant 0 : index
    %7 = vector.load %arg3[%c0_4, %c0_5] : memref<1x32xf32, #tpu.memory_space<vmem>>, vector<1x32xf32>
    %c0_6 = arith.constant 0 : index
    %c0_7 = arith.constant 0 : index
    %8 = vector.load %arg4[%c0_6, %c0_7] : memref<1x32xf32, #tpu.memory_space<vmem>>, vector<1x32xf32>
    %cst = arith.constant dense<0.000000e+00> : vector<16xf32>
    %9 = vector.multi_reduction <add>, %3, %cst [1] : vector<16x32xf32> to vector<16xf32>
    %10 = vector.shape_cast %9 : vector<16xf32> to vector<16x1xf32>
    %cst_8 = arith.constant 3.200000e+01 : f32
    %11 = vector.broadcast %cst_8 : f32 to vector<16x1xf32>
    %12 = arith.divf %10, %11 : vector<16x1xf32>
    %13 = vector.broadcast %12 : vector<16x1xf32> to vector<16x32xf32>
    %14 = arith.subf %3, %13 : vector<16x32xf32>
    %15 = arith.mulf %14, %14 : vector<16x32xf32>
    %cst_9 = arith.constant dense<0.000000e+00> : vector<16xf32>
    %16 = vector.multi_reduction <add>, %15, %cst_9 [1] : vector<16x32xf32> to vector<16xf32>
    %17 = vector.shape_cast %16 : vector<16xf32> to vector<16x1xf32>
    %cst_10 = arith.constant 3.200000e+01 : f32
    %18 = vector.broadcast %cst_10 : f32 to vector<16x1xf32>
    %19 = arith.divf %17, %18 : vector<16x1xf32>
    %20 = vector.broadcast %12 : vector<16x1xf32> to vector<16x32xf32>
    %21 = arith.subf %3, %20 : vector<16x32xf32>
    %cst_11 = arith.constant 9.99999974E-6 : f32
    %22 = vector.broadcast %cst_11 : f32 to vector<16x1xf32>
    %23 = arith.addf %19, %22 : vector<16x1xf32>
    %24 = math.rsqrt %23 : vector<16x1xf32>
    %25 = vector.broadcast %24 : vector<16x1xf32> to vector<16x32xf32>
    %26 = arith.mulf %21, %25 : vector<16x32xf32>
    %27 = vector.broadcast %7 : vector<1x32xf32> to vector<16x32xf32>
    %28 = arith.mulf %26, %27 : vector<16x32xf32>
    %29 = vector.broadcast %8 : vector<1x32xf32> to vector<16x32xf32>
    %30 = arith.addf %28, %29 : vector<16x32xf32>
    %c0_12 = arith.constant 0 : index
    %c0_13 = arith.constant 0 : index
    %31 = vector.load %arg3[%c0_12, %c0_13] : memref<1x32xf32, #tpu.memory_space<vmem>>, vector<1x32xf32>
    %c0_14 = arith.constant 0 : index
    %c0_15 = arith.constant 0 : index
    %32 = vector.load %arg4[%c0_14, %c0_15] : memref<1x32xf32, #tpu.memory_space<vmem>>, vector<1x32xf32>
    %cst_16 = arith.constant dense<0.000000e+00> : vector<8xf32>
    %33 = vector.multi_reduction <add>, %6, %cst_16 [1] : vector<8x32xf32> to vector<8xf32>
    %34 = vector.shape_cast %33 : vector<8xf32> to vector<8x1xf32>
    %cst_17 = arith.constant 3.200000e+01 : f32
    %35 = vector.broadcast %cst_17 : f32 to vector<8x1xf32>
    %36 = arith.divf %34, %35 : vector<8x1xf32>
    %37 = vector.broadcast %36 : vector<8x1xf32> to vector<8x32xf32>
    %38 = arith.subf %6, %37 : vector<8x32xf32>
    %39 = arith.mulf %38, %38 : vector<8x32xf32>
    %cst_18 = arith.constant dense<0.000000e+00> : vector<8xf32>
    %40 = vector.multi_reduction <add>, %39, %cst_18 [1] : vector<8x32xf32> to vector<8xf32>
    %41 = vector.shape_cast %40 : vector<8xf32> to vector<8x1xf32>
    %cst_19 = arith.constant 3.200000e+01 : f32
    %42 = vector.broadcast %cst_19 : f32 to vector<8x1xf32>
    %43 = arith.divf %41, %42 : vector<8x1xf32>
    %44 = vector.broadcast %36 : vector<8x1xf32> to vector<8x32xf32>
    %45 = arith.subf %6, %44 : vector<8x32xf32>
    %cst_20 = arith.constant 9.99999974E-6 : f32
    %46 = vector.broadcast %cst_20 : f32 to vector<8x1xf32>
    %47 = arith.addf %43, %46 : vector<8x1xf32>
    %48 = math.rsqrt %47 : vector<8x1xf32>
    %49 = vector.broadcast %48 : vector<8x1xf32> to vector<8x32xf32>
    %50 = arith.mulf %45, %49 : vector<8x32xf32>
    %51 = vector.broadcast %31 : vector<1x32xf32> to vector<8x32xf32>
    %52 = arith.mulf %50, %51 : vector<8x32xf32>
    %53 = vector.broadcast %32 : vector<1x32xf32> to vector<8x32xf32>
    %54 = arith.addf %52, %53 : vector<8x32xf32>
    %55 = arith.truncf %54 : vector<8x32xf32> to vector<8x32xbf16>
    %c0_21 = arith.constant 0 : index
    %c0_22 = arith.constant 0 : index
    %56 = vector.load %arg5[%c0_21, %c0_22] : memref<32x32xbf16, #tpu.memory_space<vmem>>, vector<32x32xbf16>
    %cst_23 = arith.constant dense<0.000000e+00> : vector<8x32xf32>
    %57 = tpu.matmul %55, %56, %cst_23 {dimension_numbers = #tpu.dot_dimension_numbers<[1], [0], [0], [1], [0, 0, 1, 1], [], []>} : vector<8x32xbf16>, vector<32x32xbf16>, vector<8x32xf32> -> vector<8x32xf32>
    %58 = arith.truncf %57 : vector<8x32xf32> to vector<8x32xbf16>
    %59 = arith.truncf %30 : vector<16x32xf32> to vector<16x32xbf16>
    %c0_24 = arith.constant 0 : index
    %c0_25 = arith.constant 0 : index
    %60 = vector.load %arg6[%c0_24, %c0_25] : memref<32x64xbf16, #tpu.memory_space<vmem>>, vector<32x64xbf16>
    %cst_26 = arith.constant dense<0.000000e+00> : vector<16x64xf32>
    %61 = tpu.matmul %59, %60, %cst_26 {dimension_numbers = #tpu.dot_dimension_numbers<[1], [0], [0], [1], [0, 0, 1, 1], [], []>} : vector<16x32xbf16>, vector<32x64xbf16>, vector<16x64xf32> -> vector<16x64xf32>
    %62 = arith.truncf %61 : vector<16x64xf32> to vector<16x64xbf16>
    %63 = vector.extract_strided_slice %58 {offsets = [0, 0], sizes = [8, 8], strides = [1, 1]} : vector<8x32xbf16> to vector<8x8xbf16>
    %64 = vector.extract_strided_slice %62 {offsets = [0, 0], sizes = [16, 8], strides = [1, 1]} : vector<16x64xbf16> to vector<16x8xbf16>
    %65 = vector.extract_strided_slice %62 {offsets = [0, 32], sizes = [16, 8], strides = [1, 1]} : vector<16x64xbf16> to vector<16x8xbf16>
    %cst_27 = arith.constant dense<0.000000e+00> : vector<8x16xf32>
    %66 = tpu.matmul %63, %64, %cst_27 {dimension_numbers = #tpu.dot_dimension_numbers<[1], [1], [0], [0], [0, 0, 1, 0], [], []>} : vector<8x8xbf16>, vector<16x8xbf16>, vector<8x16xf32> -> vector<8x16xf32>
    %cst_28 = arith.constant dense<0xFF800000> : vector<8xf32>
    %67 = vector.multi_reduction <maximumf>, %66, %cst_28 [1] : vector<8x16xf32> to vector<8xf32>
    %68 = vector.shape_cast %67 : vector<8xf32> to vector<8x1xf32>
    %69 = vector.broadcast %68 : vector<8x1xf32> to vector<8x16xf32>
    %70 = arith.subf %66, %69 : vector<8x16xf32>
    %71 = math.exp %70 : vector<8x16xf32>
    %cst_29 = arith.constant dense<0.000000e+00> : vector<8xf32>
    %72 = vector.multi_reduction <add>, %71, %cst_29 [1] : vector<8x16xf32> to vector<8xf32>
    %73 = vector.shape_cast %72 : vector<8xf32> to vector<8x1xf32>
    %74 = tpu.reciprocal %73 {approx = true} : vector<8x1xf32> -> vector<8x1xf32>
    %75 = vector.broadcast %74 : vector<8x1xf32> to vector<8x16xf32>
    %76 = arith.mulf %71, %75 : vector<8x16xf32>
    %77 = arith.truncf %76 : vector<8x16xf32> to vector<8x16xbf16>
    %cst_30 = arith.constant dense<0.000000e+00> : vector<8x8xf32>
    %78 = tpu.matmul %77, %65, %cst_30 {dimension_numbers = #tpu.dot_dimension_numbers<[1], [0], [0], [1], [0, 0, 1, 1], [], []>} : vector<8x16xbf16>, vector<16x8xbf16>, vector<8x8xf32> -> vector<8x8xf32>
    %c0_31 = arith.constant 0 : index
    %c0_32 = arith.constant 0 : index
    %79 = vector.load %arg16[%c0_31, %c0_32] : memref<8x32xf32, #tpu.memory_space<vmem>>, vector<8x8xf32>
    tpu.vector_store %arg16[%c0_31, %c0_32], %78 {strides = array<i32>} : memref<8x32xf32, #tpu.memory_space<vmem>>, vector<8x8xf32>,
    %80 = vector.extract_strided_slice %58 {offsets = [0, 8], sizes = [8, 8], strides = [1, 1]} : vector<8x32xbf16> to vector<8x8xbf16>
    %81 = vector.extract_strided_slice %62 {offsets = [0, 8], sizes = [16, 8], strides = [1, 1]} : vector<16x64xbf16> to vector<16x8xbf16>
    %82 = vector.extract_strided_slice %62 {offsets = [0, 40], sizes = [16, 8], strides = [1, 1]} : vector<16x64xbf16> to vector<16x8xbf16>
    %cst_33 = arith.constant dense<0.000000e+00> : vector<8x16xf32>
    %83 = tpu.matmul %80, %81, %cst_33 {dimension_numbers = #tpu.dot_dimension_numbers<[1], [1], [0], [0], [0, 0, 1, 0], [], []>} : vector<8x8xbf16>, vector<16x8xbf16>, vector<8x16xf32> -> vector<8x16xf32>
    %cst_34 = arith.constant dense<0xFF800000> : vector<8xf32>
    %84 = vector.multi_reduction <maximumf>, %83, %cst_34 [1] : vector<8x16xf32> to vector<8xf32>
    %85 = vector.shape_cast %84 : vector<8xf32> to vector<8x1xf32>
    %86 = vector.broadcast %85 : vector<8x1xf32> to vector<8x16xf32>
    %87 = arith.subf %83, %86 : vector<8x16xf32>
    %88 = math.exp %87 : vector<8x16xf32>
    %cst_35 = arith.constant dense<0.000000e+00> : vector<8xf32>
    %89 = vector.multi_reduction <add>, %88, %cst_35 [1] : vector<8x16xf32> to vector<8xf32>
    %90 = vector.shape_cast %89 : vector<8xf32> to vector<8x1xf32>
    %91 = tpu.reciprocal %90 {approx = true} : vector<8x1xf32> -> vector<8x1xf32>
    %92 = vector.broadcast %91 : vector<8x1xf32> to vector<8x16xf32>
    %93 = arith.mulf %88, %92 : vector<8x16xf32>
    %94 = arith.truncf %93 : vector<8x16xf32> to vector<8x16xbf16>
    %cst_36 = arith.constant dense<0.000000e+00> : vector<8x8xf32>
    %95 = tpu.matmul %94, %82, %cst_36 {dimension_numbers = #tpu.dot_dimension_numbers<[1], [0], [0], [1], [0, 0, 1, 1], [], []>} : vector<8x16xbf16>, vector<16x8xbf16>, vector<8x8xf32> -> vector<8x8xf32>
    %c0_37 = arith.constant 0 : index
    %c8 = arith.constant 8 : index
    %96 = vector.load %arg16[%c0_37, %c8] : memref<8x32xf32, #tpu.memory_space<vmem>>, vector<8x8xf32>
    tpu.vector_store %arg16[%c0_37, %c8], %95 {strides = array<i32>} : memref<8x32xf32, #tpu.memory_space<vmem>>, vector<8x8xf32>,
    %97 = vector.extract_strided_slice %58 {offsets = [0, 16], sizes = [8, 8], strides = [1, 1]} : vector<8x32xbf16> to vector<8x8xbf16>
    %98 = vector.extract_strided_slice %62 {offsets = [0, 16], sizes = [16, 8], strides = [1, 1]} : vector<16x64xbf16> to vector<16x8xbf16>
    %99 = vector.extract_strided_slice %62 {offsets = [0, 48], sizes = [16, 8], strides = [1, 1]} : vector<16x64xbf16> to vector<16x8xbf16>
    %cst_38 = arith.constant dense<0.000000e+00> : vector<8x16xf32>
    %100 = tpu.matmul %97, %98, %cst_38 {dimension_numbers = #tpu.dot_dimension_numbers<[1], [1], [0], [0], [0, 0, 1, 0], [], []>} : vector<8x8xbf16>, vector<16x8xbf16>, vector<8x16xf32> -> vector<8x16xf32>
    %cst_39 = arith.constant dense<0xFF800000> : vector<8xf32>
    %101 = vector.multi_reduction <maximumf>, %100, %cst_39 [1] : vector<8x16xf32> to vector<8xf32>
    %102 = vector.shape_cast %101 : vector<8xf32> to vector<8x1xf32>
    %103 = vector.broadcast %102 : vector<8x1xf32> to vector<8x16xf32>
    %104 = arith.subf %100, %103 : vector<8x16xf32>
    %105 = math.exp %104 : vector<8x16xf32>
    %cst_40 = arith.constant dense<0.000000e+00> : vector<8xf32>
    %106 = vector.multi_reduction <add>, %105, %cst_40 [1] : vector<8x16xf32> to vector<8xf32>
    %107 = vector.shape_cast %106 : vector<8xf32> to vector<8x1xf32>
    %108 = tpu.reciprocal %107 {approx = true} : vector<8x1xf32> -> vector<8x1xf32>
    %109 = vector.broadcast %108 : vector<8x1xf32> to vector<8x16xf32>
    %110 = arith.mulf %105, %109 : vector<8x16xf32>
    %111 = arith.truncf %110 : vector<8x16xf32> to vector<8x16xbf16>
    %cst_41 = arith.constant dense<0.000000e+00> : vector<8x8xf32>
    %112 = tpu.matmul %111, %99, %cst_41 {dimension_numbers = #tpu.dot_dimension_numbers<[1], [0], [0], [1], [0, 0, 1, 1], [], []>} : vector<8x16xbf16>, vector<16x8xbf16>, vector<8x8xf32> -> vector<8x8xf32>
    %c0_42 = arith.constant 0 : index
    %c16 = arith.constant 16 : index
    %113 = vector.load %arg16[%c0_42, %c16] : memref<8x32xf32, #tpu.memory_space<vmem>>, vector<8x8xf32>
    tpu.vector_store %arg16[%c0_42, %c16], %112 {strides = array<i32>} : memref<8x32xf32, #tpu.memory_space<vmem>>, vector<8x8xf32>,
    %114 = vector.extract_strided_slice %58 {offsets = [0, 24], sizes = [8, 8], strides = [1, 1]} : vector<8x32xbf16> to vector<8x8xbf16>
    %115 = vector.extract_strided_slice %62 {offsets = [0, 24], sizes = [16, 8], strides = [1, 1]} : vector<16x64xbf16> to vector<16x8xbf16>
    %116 = vector.extract_strided_slice %62 {offsets = [0, 56], sizes = [16, 8], strides = [1, 1]} : vector<16x64xbf16> to vector<16x8xbf16>
    %cst_43 = arith.constant dense<0.000000e+00> : vector<8x16xf32>
    %117 = tpu.matmul %114, %115, %cst_43 {dimension_numbers = #tpu.dot_dimension_numbers<[1], [1], [0], [0], [0, 0, 1, 0], [], []>} : vector<8x8xbf16>, vector<16x8xbf16>, vector<8x16xf32> -> vector<8x16xf32>
    %cst_44 = arith.constant dense<0xFF800000> : vector<8xf32>
    %118 = vector.multi_reduction <maximumf>, %117, %cst_44 [1] : vector<8x16xf32> to vector<8xf32>
    %119 = vector.shape_cast %118 : vector<8xf32> to vector<8x1xf32>
    %120 = vector.broadcast %119 : vector<8x1xf32> to vector<8x16xf32>
    %121 = arith.subf %117, %120 : vector<8x16xf32>
    %122 = math.exp %121 : vector<8x16xf32>
    %cst_45 = arith.constant dense<0.000000e+00> : vector<8xf32>
    %123 = vector.multi_reduction <add>, %122, %cst_45 [1] : vector<8x16xf32> to vector<8xf32>
    %124 = vector.shape_cast %123 : vector<8xf32> to vector<8x1xf32>
    %125 = tpu.reciprocal %124 {approx = true} : vector<8x1xf32> -> vector<8x1xf32>
    %126 = vector.broadcast %125 : vector<8x1xf32> to vector<8x16xf32>
    %127 = arith.mulf %122, %126 : vector<8x16xf32>
    %128 = arith.truncf %127 : vector<8x16xf32> to vector<8x16xbf16>
    %cst_46 = arith.constant dense<0.000000e+00> : vector<8x8xf32>
    %129 = tpu.matmul %128, %116, %cst_46 {dimension_numbers = #tpu.dot_dimension_numbers<[1], [0], [0], [1], [0, 0, 1, 1], [], []>} : vector<8x16xbf16>, vector<16x8xbf16>, vector<8x8xf32> -> vector<8x8xf32>
    %c0_47 = arith.constant 0 : index
    %c24 = arith.constant 24 : index
    %130 = vector.load %arg16[%c0_47, %c24] : memref<8x32xf32, #tpu.memory_space<vmem>>, vector<8x8xf32>
    tpu.vector_store %arg16[%c0_47, %c24], %129 {strides = array<i32>} : memref<8x32xf32, #tpu.memory_space<vmem>>, vector<8x8xf32>,
    %c0_48 = arith.constant 0 : index
    %c0_49 = arith.constant 0 : index
    %131 = vector.load %arg16[%c0_48, %c0_49] : memref<8x32xf32, #tpu.memory_space<vmem>>, vector<8x32xf32>
    %132 = arith.truncf %131 : vector<8x32xf32> to vector<8x32xbf16>
    %c0_50 = arith.constant 0 : index
    %c0_51 = arith.constant 0 : index
    %133 = vector.load %arg7[%c0_50, %c0_51] : memref<32x32xbf16, #tpu.memory_space<vmem>>, vector<32x32xbf16>
    %cst_52 = arith.constant dense<0.000000e+00> : vector<8x32xf32>
    %134 = tpu.matmul %132, %133, %cst_52 {dimension_numbers = #tpu.dot_dimension_numbers<[1], [0], [0], [1], [0, 0, 1, 1], [], []>} : vector<8x32xbf16>, vector<32x32xbf16>, vector<8x32xf32> -> vector<8x32xf32>
    %135 = arith.addf %6, %134 : vector<8x32xf32>
    %c0_53 = arith.constant 0 : index
    %c0_54 = arith.constant 0 : index
    %136 = vector.load %arg8[%c0_53, %c0_54] : memref<1x32xf32, #tpu.memory_space<vmem>>, vector<1x32xf32>
    %137 = vector.broadcast %136 : vector<1x32xf32> to vector<8x32xf32>
    %138 = arith.addf %135, %137 : vector<8x32xf32>
    %c0_55 = arith.constant 0 : index
    %c0_56 = arith.constant 0 : index
    %139 = vector.load %arg9[%c0_55, %c0_56] : memref<1x32xf32, #tpu.memory_space<vmem>>, vector<1x32xf32>
    %c0_57 = arith.constant 0 : index
    %c0_58 = arith.constant 0 : index
    %140 = vector.load %arg10[%c0_57, %c0_58] : memref<1x32xf32, #tpu.memory_space<vmem>>, vector<1x32xf32>
    %cst_59 = arith.constant dense<0.000000e+00> : vector<8xf32>
    %141 = vector.multi_reduction <add>, %138, %cst_59 [1] : vector<8x32xf32> to vector<8xf32>
    %142 = vector.shape_cast %141 : vector<8xf32> to vector<8x1xf32>
    %cst_60 = arith.constant 3.200000e+01 : f32
    %143 = vector.broadcast %cst_60 : f32 to vector<8x1xf32>
    %144 = arith.divf %142, %143 : vector<8x1xf32>
    %145 = vector.broadcast %144 : vector<8x1xf32> to vector<8x32xf32>
    %146 = arith.subf %138, %145 : vector<8x32xf32>
    %147 = arith.mulf %146, %146 : vector<8x32xf32>
    %cst_61 = arith.constant dense<0.000000e+00> : vector<8xf32>
    %148 = vector.multi_reduction <add>, %147, %cst_61 [1] : vector<8x32xf32> to vector<8xf32>
    %149 = vector.shape_cast %148 : vector<8xf32> to vector<8x1xf32>
    %cst_62 = arith.constant 3.200000e+01 : f32
    %150 = vector.broadcast %cst_62 : f32 to vector<8x1xf32>
    %151 = arith.divf %149, %150 : vector<8x1xf32>
    %152 = vector.broadcast %144 : vector<8x1xf32> to vector<8x32xf32>
    %153 = arith.subf %138, %152 : vector<8x32xf32>
    %cst_63 = arith.constant 9.99999974E-6 : f32
    %154 = vector.broadcast %cst_63 : f32 to vector<8x1xf32>
    %155 = arith.addf %151, %154 : vector<8x1xf32>
    %156 = math.rsqrt %155 : vector<8x1xf32>
    %157 = vector.broadcast %156 : vector<8x1xf32> to vector<8x32xf32>
    %158 = arith.mulf %153, %157 : vector<8x32xf32>
    %159 = vector.broadcast %139 : vector<1x32xf32> to vector<8x32xf32>
    %160 = arith.mulf %158, %159 : vector<8x32xf32>
    %161 = vector.broadcast %140 : vector<1x32xf32> to vector<8x32xf32>
    %162 = arith.addf %160, %161 : vector<8x32xf32>
    %163 = arith.truncf %162 : vector<8x32xf32> to vector<8x32xbf16>
    %c0_64 = arith.constant 0 : index
    %c0_65 = arith.constant 0 : index
    %164 = vector.load %arg11[%c0_64, %c0_65] : memref<32x128xbf16, #tpu.memory_space<vmem>>, vector<32x128xbf16>
    %cst_66 = arith.constant dense<0.000000e+00> : vector<8x128xf32>
    %165 = tpu.matmul %163, %164, %cst_66 {dimension_numbers = #tpu.dot_dimension_numbers<[1], [0], [0], [1], [0, 0, 1, 1], [], []>} : vector<8x32xbf16>, vector<32x128xbf16>, vector<8x128xf32> -> vector<8x128xf32>
    %c0_67 = arith.constant 0 : index
    %c0_68 = arith.constant 0 : index
    %166 = vector.load %arg12[%c0_67, %c0_68] : memref<1x128xf32, #tpu.memory_space<vmem>>, vector<1x128xf32>
    %167 = vector.broadcast %166 : vector<1x128xf32> to vector<8x128xf32>
    %168 = arith.addf %165, %167 : vector<8x128xf32>
    %cst_69 = arith.constant 0.707106769 : f32
    %169 = vector.broadcast %cst_69 : f32 to vector<8x128xf32>
    %170 = arith.mulf %168, %169 : vector<8x128xf32>
    %cst_70 = arith.constant 0.000000e+00 : f32
    %171 = vector.broadcast %cst_70 : f32 to vector<8x128xf32>
    %172 = arith.cmpf oge, %170, %171 : vector<8x128xf32>
    %cst_71 = arith.constant 1.000000e+00 : f32
    %cst_72 = arith.constant -1.000000e+00 : f32
    %173 = vector.broadcast %cst_71 : f32 to vector<8x128xf32>
    %174 = vector.broadcast %cst_72 : f32 to vector<8x128xf32>
    %175 = arith.select %172, %173, %174 : vector<8x128xi1>, vector<8x128xf32>
    %176 = math.absf %170 : vector<8x128xf32>
    %cst_73 = arith.constant 0.327591091 : f32
    %177 = vector.broadcast %cst_73 : f32 to vector<8x128xf32>
    %178 = arith.mulf %177, %176 : vector<8x128xf32>
    %cst_74 = arith.constant 1.000000e+00 : f32
    %179 = vector.broadcast %cst_74 : f32 to vector<8x128xf32>
    %180 = arith.addf %179, %178 : vector<8x128xf32>
    %cst_75 = arith.constant 1.000000e+00 : f32
    %181 = vector.broadcast %cst_75 : f32 to vector<8x128xf32>
    %182 = arith.divf %181, %180 : vector<8x128xf32>
    %cst_76 = arith.constant 1.06140542 : f32
    %183 = vector.broadcast %cst_76 : f32 to vector<8x128xf32>
    %184 = arith.mulf %183, %182 : vector<8x128xf32>
    %cst_77 = arith.constant -1.45315206 : f32
    %185 = vector.broadcast %cst_77 : f32 to vector<8x128xf32>
    %186 = arith.addf %184, %185 : vector<8x128xf32>
    %187 = arith.mulf %186, %182 : vector<8x128xf32>
    %cst_78 = arith.constant 1.42141378 : f32
    %188 = vector.broadcast %cst_78 : f32 to vector<8x128xf32>
    %189 = arith.addf %187, %188 : vector<8x128xf32>
    %190 = arith.mulf %189, %182 : vector<8x128xf32>
    %cst_79 = arith.constant -0.284496725 : f32
    %191 = vector.broadcast %cst_79 : f32 to vector<8x128xf32>
    %192 = arith.addf %190, %191 : vector<8x128xf32>
    %193 = arith.mulf %192, %182 : vector<8x128xf32>
    %cst_80 = arith.constant 0.254829586 : f32
    %194 = vector.broadcast %cst_80 : f32 to vector<8x128xf32>
    %195 = arith.addf %193, %194 : vector<8x128xf32>
    %196 = arith.mulf %195, %182 : vector<8x128xf32>
    %cst_81 = arith.constant 0.000000e+00 : f32
    %197 = vector.broadcast %cst_81 : f32 to vector<8x128xf32>
    %198 = arith.subf %197, %176 : vector<8x128xf32>
    %199 = arith.mulf %198, %176 : vector<8x128xf32>
    %200 = math.exp %199 : vector<8x128xf32>
    %201 = arith.mulf %196, %200 : vector<8x128xf32>
    %cst_82 = arith.constant 1.000000e+00 : f32
    %202 = vector.broadcast %cst_82 : f32 to vector<8x128xf32>
    %203 = arith.subf %202, %201 : vector<8x128xf32>
    %204 = arith.mulf %175, %203 : vector<8x128xf32>
    %cst_83 = arith.constant 5.000000e-01 : f32
    %205 = vector.broadcast %cst_83 : f32 to vector<8x128xf32>
    %206 = arith.mulf %205, %168 : vector<8x128xf32>
    %cst_84 = arith.constant 1.000000e+00 : f32
    %207 = vector.broadcast %cst_84 : f32 to vector<8x128xf32>
    %208 = arith.addf %207, %204 : vector<8x128xf32>
    %209 = arith.mulf %206, %208 : vector<8x128xf32>
    %210 = arith.truncf %209 : vector<8x128xf32> to vector<8x128xbf16>
    %c0_85 = arith.constant 0 : index
    %c0_86 = arith.constant 0 : index
    %211 = vector.load %arg13[%c0_85, %c0_86] : memref<128x32xbf16, #tpu.memory_space<vmem>>, vector<128x32xbf16>
    %cst_87 = arith.constant dense<0.000000e+00> : vector<8x32xf32>
    %212 = tpu.matmul %210, %211, %cst_87 {dimension_numbers = #tpu.dot_dimension_numbers<[1], [0], [0], [1], [0, 0, 1, 1], [], []>} : vector<8x128xbf16>, vector<128x32xbf16>, vector<8x32xf32> -> vector<8x32xf32>
    %c0_88 = arith.constant 0 : index
    %c0_89 = arith.constant 0 : index
    %213 = vector.load %arg14[%c0_88, %c0_89] : memref<1x32xf32, #tpu.memory_space<vmem>>, vector<1x32xf32>
    %214 = vector.broadcast %213 : vector<1x32xf32> to vector<8x32xf32>
    %215 = arith.addf %212, %214 : vector<8x32xf32>
    %216 = arith.addf %138, %215 : vector<8x32xf32>
    %c0_90 = arith.constant 0 : index
    %c0_91 = arith.constant 0 : index
    %c0_92 = arith.constant 0 : index
    %217 = vector.load %arg15[%c0_90, %c0_91, %c0_92] : memref<1x8x32xf32, #tpu.memory_space<vmem>>, vector<1x8x32xf32>
    %218 = vector.shape_cast %217 : vector<1x8x32xf32> to vector<8x32xf32>
    %219 = vector.shape_cast %216 : vector<8x32xf32> to vector<1x8x32xf32>
    tpu.vector_store %arg15[%c0_90, %c0_91, %c0_92], %219 {strides = array<i32>} : memref<1x8x32xf32, #tpu.memory_space<vmem>>, vector<1x8x32xf32>,
    return
  }
  func.func @transform_0(%arg0: i32, %arg1: i32) -> (i32, i32, i32) {
    %c0_i32 = arith.constant 0 : i32
    %c0_i32_0 = arith.constant 0 : i32
    %c0_i32_1 = arith.constant 0 : i32
    return %arg0, %c0_i32, %c0_i32_0 : i32, i32, i32
  }
  func.func @transform_1(%arg0: i32, %arg1: i32) -> (i32, i32) {
    %c0_i32 = arith.constant 0 : i32
    %c0_i32_0 = arith.constant 0 : i32
    %c0_i32_1 = arith.constant 0 : i32
    return %c0_i32, %c0_i32_0 : i32, i32
  }
  func.func @transform_2(%arg0: i32, %arg1: i32) -> (i32, i32) {
    %c0_i32 = arith.constant 0 : i32
    %c0_i32_0 = arith.constant 0 : i32
    %c0_i32_1 = arith.constant 0 : i32
    return %c0_i32, %c0_i32_0 : i32, i32
  }
  func.func @transform_3(%arg0: i32, %arg1: i32) -> (i32, i32) {
    %c0_i32 = arith.constant 0 : i32
    %c0_i32_0 = arith.constant 0 : i32
    %c0_i32_1 = arith.constant 0 : i32
    return %c0_i32, %c0_i32_0 : i32, i32
  }
  func.func @transform_4(%arg0: i32, %arg1: i32) -> (i32, i32) {
    %c0_i32 = arith.constant 0 : i32
    %c0_i32_0 = arith.constant 0 : i32
    %c0_i32_1 = arith.constant 0 : i32
    return %c0_i32, %c0_i32_0 : i32, i32
  }
  func.func @transform_5(%arg0: i32, %arg1: i32) -> (i32, i32) {
    %c0_i32 = arith.constant 0 : i32
    %c0_i32_0 = arith.constant 0 : i32
    %c0_i32_1 = arith.constant 0 : i32
    return %c0_i32, %c0_i32_0 : i32, i32
  }
  func.func @transform_6(%arg0: i32, %arg1: i32) -> (i32, i32) {
    %c0_i32 = arith.constant 0 : i32
    %c0_i32_0 = arith.constant 0 : i32
    %c0_i32_1 = arith.constant 0 : i32
    return %c0_i32, %c0_i32_0 : i32, i32
  }
  func.func @transform_7(%arg0: i32, %arg1: i32) -> (i32, i32) {
    %c0_i32 = arith.constant 0 : i32
    %c0_i32_0 = arith.constant 0 : i32
    %c0_i32_1 = arith.constant 0 : i32
    return %c0_i32, %c0_i32_0 : i32, i32
  }
  func.func @transform_8(%arg0: i32, %arg1: i32) -> (i32, i32) {
    %c0_i32 = arith.constant 0 : i32
    %c0_i32_0 = arith.constant 0 : i32
    %c0_i32_1 = arith.constant 0 : i32
    return %c0_i32, %c0_i32_0 : i32, i32
  }
  func.func @transform_9(%arg0: i32, %arg1: i32) -> (i32, i32) {
    %c0_i32 = arith.constant 0 : i32
    %c0_i32_0 = arith.constant 0 : i32
    %c0_i32_1 = arith.constant 0 : i32
    return %c0_i32, %c0_i32_0 : i32, i32
  }
  func.func @transform_10(%arg0: i32, %arg1: i32) -> (i32, i32) {
    %c0_i32 = arith.constant 0 : i32
    %c0_i32_0 = arith.constant 0 : i32
    %c0_i32_1 = arith.constant 0 : i32
    return %c0_i32, %c0_i32_0 : i32, i32
  }
  func.func @transform_11(%arg0: i32, %arg1: i32) -> (i32, i32) {
    %c0_i32 = arith.constant 0 : i32
    %c0_i32_0 = arith.constant 0 : i32
    %c0_i32_1 = arith.constant 0 : i32
    return %c0_i32, %c0_i32_0 : i32, i32
  }
  func.func @transform_12(%arg0: i32, %arg1: i32) -> (i32, i32) {
    %c0_i32 = arith.constant 0 : i32
    %c0_i32_0 = arith.constant 0 : i32
    %c0_i32_1 = arith.constant 0 : i32
    return %c0_i32, %c0_i32_0 : i32, i32
  }
  func.func @transform_13(%arg0: i32, %arg1: i32) -> (i32, i32, i32) {
    %c0_i32 = arith.constant 0 : i32
    %c0_i32_0 = arith.constant 0 : i32
    return %arg0, %arg1, %c0_i32 : i32, i32, i32
  }
}

</mosaic_0001>

<llo_original>
// kernel: tpu_custom_call.1
$region0: #{tpu_custom_call.1}
  #allocation0 [shape = 'u32[]', space=smem, size = 0x4, offset = 0x4, fixed_abs, tag = 'smem constant byte address 0x4 - core index']
  #allocation1 [shape = 'u32[144,128]{1,0:T(1,128)}', space=vmem, size = 0x12000, scoped, tag = 'internal scratch']
  %s0 = inlined_call_operand.hbm [shape: f32[8,128], index: 0, kind: input, shape index: {}]
  %s1 = inlined_call_operand.hbm [shape: f32[8,128], index: 1, kind: output, shape index: {}]
  %s2 = sld [smem:[#allocation0]]
  $region18: #{tpu_custom_call.1} parent=0
    _
  %s4 = ssub.s32 1, %s2
  %s5 = scalar_select 0, %s4, %s2
  $region1: #{tpu_custom_call.1} parent=0
    #allocation2 [shape = 'u8[4096]{0}', space=vmem, size = 0x1000, scoped, tag = 'input window, operand 0, single buffered']
    #allocation3 [shape = 's32[1]{0}', space=sflag, size = 0x4, scoped, tag = 'scoped memory for tpu_custom_call.1']
    #allocation4 [shape = 's32[1]{0}', space=sflag, size = 0x4, scoped, tag = 'scoped memory for tpu_custom_call.1']
    #allocation5 [shape = 'u8[4096]{0}', space=vmem, size = 0x1000, scoped, tag = 'output window, operand 0, single buffered']
    %6 = vsyncpa [#allocation3], 0
    %7 = vsyncpa [#allocation4], 0
    // Predicated region
    $region2: #{tpu_custom_call.1} parent=1 // pred_check
      _
    $region3: #{tpu_custom_call.1} parent=1 // pred_check_branch
      %9 = sbr.rel (0) target = $region5
    $region4: #{tpu_custom_call.1} parent=1 // pred_region
      %s11 = ssub.s32 128, 128
      %12 = vsyncadd [#allocation3], %s11
      %s14 = sshll.u32 [#allocation2], 4
      %s15 = int_to_ptr.vmem [resolvable:$true] %s14
      %17 = dma.hbm_to_vmem [thread:$0]  %s0, 128, %s15, [#allocation3]
    $region5: #{tpu_custom_call.1} parent=1 // pred_fallthru
      _
    // Predicated region
    $region6: #{tpu_custom_call.1} parent=1 // pred_check
      _
    $region7: #{tpu_custom_call.1} parent=1 // pred_check_branch
      %19 = sbr.rel (0) target = $region9
    $region8: #{tpu_custom_call.1} parent=1 // pred_region
      %20 = dma.done [#allocation3], 128
    $region9: #{tpu_custom_call.1} parent=1 // pred_fallthru
      _
    %v21 = vld [vmem:[#allocation2] sm:$0xff]
    %v22 = verf.f32.pop %v21
    %23 = vst [vmem:[#allocation5] sm:$0xff] %v22
    // Predicated region
    $region10: #{tpu_custom_call.1} parent=1 // pred_check
      _
    $region11: #{tpu_custom_call.1} parent=1 // pred_check_branch
      %25 = sbr.rel (0) target = $region13
    $region12: #{tpu_custom_call.1} parent=1 // pred_region
      %s27 = ssub.s32 128, 128
      %28 = vsyncadd [#allocation4], %s27
      %s30 = sshll.u32 [#allocation5], 4
      %s31 = int_to_ptr.vmem [resolvable:$true] %s30
      %33 = dma.vmem_to_hbm [thread:$0]  %s31, 128, %s1, [#allocation4]
    $region13: #{tpu_custom_call.1} parent=1 // pred_fallthru
      _
    // Predicated region
    $region14: #{tpu_custom_call.1} parent=1 // pred_check
      _
    $region15: #{tpu_custom_call.1} parent=1 // pred_check_branch
      %35 = sbr.rel (0) target = $region17
    $region16: #{tpu_custom_call.1} parent=1 // pred_region
      %36 = dma.done [#allocation4], 128
    $region17: #{tpu_custom_call.1} parent=1 // pred_fallthru
      _
    %37 = vsyncpa [#allocation3], 1
    %38 = vsyncpa [#allocation4], 1

// kernel: tpu_custom_call.1
$region0: #{tpu_custom_call.1}
  #allocation0 [shape = 'u32[]', space=smem, size = 0x4, offset = 0x4, fixed_abs, tag = 'smem constant byte address 0x4 - core index']
  #allocation1 [shape = 'u32[144,128]{1,0:T(1,128)}', space=vmem, size = 0x12000, scoped, tag = 'internal scratch']
  %s0 = inlined_call_operand.hbm [shape: f32[8,128], index: 0, kind: input, shape index: {}]
  %s1 = inlined_call_operand.hbm [shape: f32[16,128], index: 1, kind: output, shape index: {}]
  %s2 = sld [smem:[#allocation0]]
  $region41: #{tpu_custom_call.1} parent=0
    _
  %s4 = ssub.s32 1, %s2
  %s5 = scalar_select 0, %s4, %s2
  $region1: #{tpu_custom_call.1} parent=0
    #allocation2 [shape = 'u8[4096]{0}', space=vmem, size = 0x1000, scoped, tag = 'input window, operand 0, single buffered']
    #allocation3 [shape = 's32[2]{0}', space=sflag, size = 0x8, scoped, tag = 'scoped memory for tpu_custom_call.1']
    #allocation4 [shape = 's32[2]{0}', space=sflag, size = 0x8, scoped, tag = 'scoped memory for tpu_custom_call.1']
    #allocation5 [shape = 'u8[8192]{0}', space=vmem, size = 0x2000, scoped, tag = 'output window, operand 0']
    %6 = vsyncpa [#allocation3], 0
    %7 = vsyncpa [#allocation4], 0
    %s8 = scalar_lea.sflag [#allocation4], 1
    %9 = vsyncpa %s8, 0
    loop: start=0, step=1, limit=4
    $region2: #{tpu_custom_call.1} parent=1 // loop_pre_header
      _
    $region3: #{tpu_custom_call.1} parent=1 // loop_header
      %s11 = sphi 0, %s15
      %p12 = scmp.ge.s32.totalorder %s11, 4
      %s19 = sphi 0, %s19
      %s21 = sphi 0, %s19
      %s22 = sphi 0, %s21
      %s36 = sphi 0, %s22
      %s42 = sphi 0, %s44
      %s45 = sphi 0, %s42
      %s46 = sphi 0, %s45
      %s62 = sphi 0, %s46
    $region4: #{tpu_custom_call.1} parent=1 // loop_header_branch
      %14 = sbr.rel (%p12) target = $region8
    $region5: #{tpu_custom_call.1} parent=1 // loop_body
      %s16 = ssub.s32 %s11, 1
      %s17 = ssub.s32 %s11, 2
      %s18 = sadd.s32 %s11, 1
      %s20 = sadd.s32 %s19, 1
      %p23 = scmp.eq.s32.totalorder %s11, 1
      %p24 = scmp.ne.s32.totalorder %s19, %s21
      %p25 = scmp.eq.s32.totalorder %s11, 0
      %p26 = por %p24, %p25
      %p27 = scmp.ne.s32.totalorder %s19, %s21
      %p28 = scmp.eq.s32.totalorder %s16, 1
      %p29 = por %p27, %p28
      %p30 = scmp.ne.s32.totalorder %s21, %s22
      %p31 = scmp.eq.s32.totalorder %s16, 0
      %p32 = por %p30, %p31
      %p33 = scmp.ne.s32.totalorder %s21, %s22
      %p34 = scmp.eq.s32.totalorder %s17, 1
      %p35 = por %p33, %p34
      %p37 = scmp.ne.s32.totalorder %s22, %s36
      %p38 = scmp.eq.s32.totalorder %s17, 0
      %p39 = por %p37, %p38
      %s40 = ssub.s32 %s11, %s18
      %p41 = scmp.eq.s32.totalorder %s40, 0
      %s43 = sadd.s32 %s42, 1
      %s44 = scalar_select %p41, %s42, %s43
      %p47 = pneg %p41
      %p48 = scmp.eq.s32.totalorder %s11, 1
      %p49 = por %p47, %p48
      %p50 = scmp.ne.s32.totalorder %s42, %s45
      %p51 = scmp.eq.s32.totalorder %s11, 0
      %p52 = por %p50, %p51
      %p53 = scmp.ne.s32.totalorder %s42, %s45
      %p54 = scmp.eq.s32.totalorder %s16, 1
      %p55 = por %p53, %p54
      %p56 = scmp.ne.s32.totalorder %s45, %s46
      %p57 = scmp.eq.s32.totalorder %s16, 0
      %p58 = por %p56, %p57
      %p59 = scmp.ne.s32.totalorder %s45, %s46
      %p60 = scmp.eq.s32.totalorder %s17, 1
      %p61 = por %p59, %p60
      %p63 = scmp.ne.s32.totalorder %s46, %s62
      %p64 = scmp.eq.s32.totalorder %s17, 0
      %p65 = por %p63, %p64
      %p66 = scmp.le.s32.totalorder 1, %s11
      %p67 = scmp.lt.s32.totalorder %s11, 3
      %p68 = pnand %p66, %p67
      %p69 = pneg %p68
      // Predicated region
      $region9: #{tpu_custom_call.1} parent=5 // pred_check
        _
      $region10: #{tpu_custom_call.1} parent=5 // pred_check_branch
        %71 = sbr.rel (%p68) target = $region12
      $region11: #{tpu_custom_call.1} parent=5 // pred_region
        %s72 = ssub.s32 %s11, 1
        // Predicated region
        $region13: #{tpu_custom_call.1} parent=11 // pred_check
          %p73 = pneg %p32
        $region14: #{tpu_custom_call.1} parent=11 // pred_check_branch
          %75 = sbr.rel (%p73) target = $region16
        $region15: #{tpu_custom_call.1} parent=11 // pred_region
          %s77 = ssub.s32 128, 128
          %78 = vsyncadd [#allocation3], %s77
          %s80 = sshll.u32 [#allocation2], 4
          %s81 = int_to_ptr.vmem [resolvable:$true] %s80
          %83 = dma.hbm_to_vmem [thread:$0]  %s0, 128, %s81, [#allocation3]
        $region16: #{tpu_custom_call.1} parent=11 // pred_fallthru
          _
      $region12: #{tpu_custom_call.1} parent=5 // pred_fallthru
        _
      %p84 = scmp.lt.s32.totalorder %s11, 2
      // Predicated region
      $region17: #{tpu_custom_call.1} parent=5 // pred_check
        %p85 = pneg %p84
      $region18: #{tpu_custom_call.1} parent=5 // pred_check_branch
        %87 = sbr.rel (%p85) target = $region20
      $region19: #{tpu_custom_call.1} parent=5 // pred_region
        _
      $region20: #{tpu_custom_call.1} parent=5 // pred_fallthru
        _
      %p88 = scmp.le.s32.totalorder 1, %s11
      %p89 = scmp.lt.s32.totalorder %s11, 3
      %p90 = pnand %p88, %p89
      %p91 = pneg %p90
      // Predicated region
      $region21: #{tpu_custom_call.1} parent=5 // pred_check
        _
      $region22: #{tpu_custom_call.1} parent=5 // pred_check_branch
        %93 = sbr.rel (%p90) target = $region24
      $region23: #{tpu_custom_call.1} parent=5 // pred_region
        %s94 = ssub.s32 %s11, 1
        // Predicated region
        $region25: #{tpu_custom_call.1} parent=23 // pred_check
          %p95 = pneg %p32
        $region26: #{tpu_custom_call.1} parent=23 // pred_check_branch
          %97 = sbr.rel (%p95) target = $region28
        $region27: #{tpu_custom_call.1} parent=23 // pred_region
          %98 = dma.done [#allocation3], 128
        $region28: #{tpu_custom_call.1} parent=23 // pred_fallthru
          _
        %p99 = pneg %p32
        %p100 = pneg %p29
        %p101 = pneg %p58
        %p102 = pneg %p55
        %s103 = sand.u32 %s45, 1
        %s104 = scalar_lea.sflag [#allocation4], %s103
        %s105 = sand.u32 %s45, 1
        %s106 = smul.addr %s105, 8
        %s107 = scalar_lea.vmem [#allocation5], %s106
        %v108 = vld [vmem:[#allocation2] sm:$0xff]
        %109 = vst [vmem:[%s107] sm:$0xff] %v108
        %s110 = sand.u32 %s45, 1
        %s111 = scalar_lea.sflag [#allocation4], %s110
        %s112 = sand.u32 %s45, 1
        %s113 = smul.addr %s112, 8
        %s114 = scalar_lea.vmem [#allocation5], %s113
        // Predicated region
        $region29: #{tpu_custom_call.1} parent=23 // pred_check
          %p115 = pneg %p55
        $region30: #{tpu_custom_call.1} parent=23 // pred_check_branch
          %117 = sbr.rel (%p115) target = $region32
        $region31: #{tpu_custom_call.1} parent=23 // pred_region
          %s119 = ssub.s32 128, 128
          %120 = vsyncadd %s111, %s119
          %s121 = smul.addr %s16, 128
          %s122 = scalar_lea.hbm %s1, %s121
          %s124 = sshll.u32 %s114, 4
          %s125 = int_to_ptr.vmem [resolvable:$true] %s124
          %127 = dma.vmem_to_hbm [thread:$0]  %s125, 128, %s122, %s111
        $region32: #{tpu_custom_call.1} parent=23 // pred_fallthru
          _
      $region24: #{tpu_custom_call.1} parent=5 // pred_fallthru
        _
      %p128 = scmp.le.s32.totalorder 2, %s11
      // Predicated region
      $region33: #{tpu_custom_call.1} parent=5 // pred_check
        %p129 = pneg %p128
      $region34: #{tpu_custom_call.1} parent=5 // pred_check_branch
        %131 = sbr.rel (%p129) target = $region36
      $region35: #{tpu_custom_call.1} parent=5 // pred_region
        %s132 = ssub.s32 %s11, 2
        // Predicated region
        $region37: #{tpu_custom_call.1} parent=35 // pred_check
          %p133 = pneg %p61
        $region38: #{tpu_custom_call.1} parent=35 // pred_check_branch
          %135 = sbr.rel (%p133) target = $region40
        $region39: #{tpu_custom_call.1} parent=35 // pred_region
          %s136 = sand.u32 %s46, 1
          %s137 = scalar_lea.sflag [#allocation4], %s136
          %s138 = sand.u32 %s46, 1
          %s139 = smul.addr %s138, 8
          %s140 = scalar_lea.vmem [#allocation5], %s139
          %141 = dma.done %s137, 128
        $region40: #{tpu_custom_call.1} parent=35 // pred_fallthru
          _
      $region36: #{tpu_custom_call.1} parent=5 // pred_fallthru
        _
    $region6: #{tpu_custom_call.1} parent=1 // loop_footer
      %s15 = sadd.s32 1, %s11
    $region7: #{tpu_custom_call.1} parent=1 // loop_footer_branch
      %10 = sbr.rel target = $region3
    $region8: #{tpu_custom_call.1} parent=1 // loop_exit
      _
    %142 = vsyncpa [#allocation3], 1
    %s143 = scalar_lea.sflag [#allocation3], 1
    %144 = vsyncpa %s143, 1
    %145 = vsyncpa [#allocation4], 1
    %s146 = scalar_lea.sflag [#allocation4], 1
    %147 = vsyncpa %s146, 1

// kernel: tpu_custom_call.1
$region0: #{tpu_custom_call.1}
  #allocation0 [shape = 'u32[]', space=smem, size = 0x4, offset = 0x4, fixed_abs, tag = 'smem constant byte address 0x4 - core index']
  #allocation1 [shape = 'u32[144,128]{1,0:T(1,128)}', space=vmem, size = 0x12000, scoped, tag = 'internal scratch']
  #allocation2 [shape = 'f32[8,32]{1,0:T(8,128)}', space=vmem, size = 0x1000, scoped, tag = 'scratch operand']
  %s0 = inlined_call_operand.vmem [shape: f32[2,16,32], index: 0, kind: input, shape index: {}]
  %s1 = inlined_call_operand.vmem [shape: f32[1,32], index: 1, kind: input, shape index: {}]
  %s2 = inlined_call_operand.vmem [shape: f32[1,32], index: 2, kind: input, shape index: {}]
  %s3 = inlined_call_operand.vmem [shape: bf16[32,32], index: 3, kind: input, shape index: {}]
  %s4 = inlined_call_operand.vmem [shape: bf16[32,64], index: 4, kind: input, shape index: {}]
  %s5 = inlined_call_operand.vmem [shape: bf16[32,32], index: 5, kind: input, shape index: {}]
  %s6 = inlined_call_operand.hbm [shape: f32[1,32], index: 6, kind: input, shape index: {}]
  %s7 = inlined_call_operand.hbm [shape: f32[1,32], index: 7, kind: input, shape index: {}]
  %s8 = inlined_call_operand.hbm [shape: f32[1,32], index: 8, kind: input, shape index: {}]
  %s9 = inlined_call_operand.vmem [shape: bf16[32,128], index: 9, kind: input, shape index: {}]
  %s10 = inlined_call_operand.vmem [shape: f32[1,128], index: 10, kind: input, shape index: {}]
  %s11 = inlined_call_operand.vmem [shape: bf16[128,32], index: 11, kind: input, shape index: {}]
  %s12 = inlined_call_operand.vmem [shape: f32[1,32], index: 12, kind: input, shape index: {}]
  %s13 = inlined_call_operand.hbm [shape: f32[2,16,32], index: 13, kind: output, shape index: {}]
  %s14 = sld [smem:[#allocation0]]
  $region97: #{tpu_custom_call.1} parent=0
    _
  %s16 = ssub.s32 1, %s14
  %s17 = scalar_select 0, %s16, %s14
  $region1: #{tpu_custom_call.1} parent=0
    #allocation3 [shape = 'u8[512]{0}', space=vmem, size = 0x400, scoped, tag = 'input window, operand 6, single buffered']
    #allocation4 [shape = 's32[2]{0}', space=sflag, size = 0x8, scoped, tag = 'scoped memory for tpu_custom_call.1']
    #allocation5 [shape = 's32[2]{0}', space=sflag, size = 0x8, scoped, tag = 'scoped memory for tpu_custom_call.1']
    #allocation6 [shape = 'u8[512]{0}', space=vmem, size = 0x400, scoped, tag = 'input window, operand 7, single buffered']
    #allocation7 [shape = 's32[1]{0}', space=sflag, size = 0x4, scoped, tag = 'scoped memory for tpu_custom_call.1']
    #allocation8 [shape = 'u8[512]{0}', space=vmem, size = 0x400, scoped, tag = 'input window, operand 8, single buffered']
    #allocation9 [shape = 'u8[8192]{0}', space=vmem, size = 0x2000, scoped, tag = 'output window, operand 0']
    %18 = vsyncpa [#allocation4], 0
    %19 = vsyncpa [#allocation7], 0
    %20 = vsyncpa [#allocation5], 0
    %s21 = scalar_lea.sflag [#allocation5], 1
    %22 = vsyncpa %s21, 0
    loop: start=0, step=1, limit=6
    $region2: #{tpu_custom_call.1} parent=1 // loop_pre_header
      _
    $region3: #{tpu_custom_call.1} parent=1 // loop_header
      %s24 = sphi 0, %s28
      %p25 = scmp.ge.s32.totalorder %s24, 6
      %s31 = sphi 0, %s43
      %s32 = sphi 0, %s39
      %s33 = sphi 0, %s31
      %s34 = sphi 0, %s32
      %s35 = sphi 0, %s33
      %s36 = sphi 0, %s34
      %s46 = sphi 0, %s48
      %s49 = sphi 0, %s46
      %s50 = sphi 0, %s49
      %s66 = sphi 0, %s50
      %s70 = sphi 0, %s70
      %s72 = sphi 0, %s70
      %s73 = sphi 0, %s72
      %s87 = sphi 0, %s73
      %s91 = sphi 0, %s91
      %s93 = sphi 0, %s91
      %s94 = sphi 0, %s93
      %s108 = sphi 0, %s94
      %s112 = sphi 0, %s112
      %s114 = sphi 0, %s112
      %s115 = sphi 0, %s114
      %s129 = sphi 0, %s115
      %s133 = sphi 0, %s133
      %s135 = sphi 0, %s133
      %s136 = sphi 0, %s135
      %s150 = sphi 0, %s136
      %s154 = sphi 0, %s154
      %s156 = sphi 0, %s154
      %s157 = sphi 0, %s156
      %s171 = sphi 0, %s157
      %s175 = sphi 0, %s175
      %s177 = sphi 0, %s175
      %s178 = sphi 0, %s177
      %s192 = sphi 0, %s178
      %s196 = sphi 0, %s196
      %s198 = sphi 0, %s196
      %s199 = sphi 0, %s198
      %s213 = sphi 0, %s199
      %s217 = sphi 0, %s217
      %s219 = sphi 0, %s217
      %s220 = sphi 0, %s219
      %s234 = sphi 0, %s220
      %s238 = sphi 0, %s238
      %s240 = sphi 0, %s238
      %s241 = sphi 0, %s240
      %s255 = sphi 0, %s241
      %s259 = sphi 0, %s259
      %s261 = sphi 0, %s259
      %s262 = sphi 0, %s261
      %s276 = sphi 0, %s262
      %s280 = sphi 0, %s280
      %s282 = sphi 0, %s280
      %s283 = sphi 0, %s282
      %s297 = sphi 0, %s283
      %s301 = sphi 0, %s301
      %s303 = sphi 0, %s301
      %s304 = sphi 0, %s303
      %s318 = sphi 0, %s304
      %s326 = sphi 0, %s328
      %s329 = sphi 0, %s326
      %s330 = sphi 0, %s329
      %s346 = sphi 0, %s330
    $region4: #{tpu_custom_call.1} parent=1 // loop_header_branch
      %27 = sbr.rel (%p25) target = $region8
    $region5: #{tpu_custom_call.1} parent=1 // loop_body
      %s29 = ssub.s32 %s24, 1
      %s30 = ssub.s32 %s24, 2
      %s37 = sadd.s32 1, %s32
      %p38 = scmp.ge.s32.totalorder %s37, 2
      %s39 = scalar_select %p38, 0, %s37
      %s40 = sadd.s32 1, %s31
      %s41 = scalar_select %p38, %s40, %s31
      %p42 = scmp.ge.s32.totalorder %s41, 2
      %s43 = scalar_select %p42, 0, %s41
      %s44 = ssub.s32 %s31, %s43
      %p45 = scmp.eq.s32.totalorder %s44, 0
      %s47 = sadd.s32 %s46, 1
      %s48 = scalar_select %p45, %s46, %s47
      %p51 = pneg %p45
      %p52 = scmp.eq.s32.totalorder %s24, 3
      %p53 = por %p51, %p52
      %p54 = scmp.ne.s32.totalorder %s46, %s49
      %p55 = scmp.eq.s32.totalorder %s24, 0
      %p56 = por %p54, %p55
      %p57 = scmp.ne.s32.totalorder %s46, %s49
      %p58 = scmp.eq.s32.totalorder %s29, 3
      %p59 = por %p57, %p58
      %p60 = scmp.ne.s32.totalorder %s49, %s50
      %p61 = scmp.eq.s32.totalorder %s29, 0
      %p62 = por %p60, %p61
      %p63 = scmp.ne.s32.totalorder %s49, %s50
      %p64 = scmp.eq.s32.totalorder %s30, 3
      %p65 = por %p63, %p64
      %p67 = scmp.ne.s32.totalorder %s50, %s66
      %p68 = scmp.eq.s32.totalorder %s30, 0
      %p69 = por %p67, %p68
      %s71 = sadd.s32 %s70, 1
      %p74 = scmp.eq.s32.totalorder %s24, 3
      %p75 = scmp.ne.s32.totalorder %s70, %s72
      %p76 = scmp.eq.s32.totalorder %s24, 0
      %p77 = por %p75, %p76
      %p78 = scmp.ne.s32.totalorder %s70, %s72
      %p79 = scmp.eq.s32.totalorder %s29, 3
      %p80 = por %p78, %p79
      %p81 = scmp.ne.s32.totalorder %s72, %s73
      %p82 = scmp.eq.s32.totalorder %s29, 0
      %p83 = por %p81, %p82
      %p84 = scmp.ne.s32.totalorder %s72, %s73
      %p85 = scmp.eq.s32.totalorder %s30, 3
      %p86 = por %p84, %p85
      %p88 = scmp.ne.s32.totalorder %s73, %s87
      %p89 = scmp.eq.s32.totalorder %s30, 0
      %p90 = por %p88, %p89
      %s92 = sadd.s32 %s91, 1
      %p95 = scmp.eq.s32.totalorder %s24, 3
      %p96 = scmp.ne.s32.totalorder %s91, %s93
      %p97 = scmp.eq.s32.totalorder %s24, 0
      %p98 = por %p96, %p97
      %p99 = scmp.ne.s32.totalorder %s91, %s93
      %p100 = scmp.eq.s32.totalorder %s29, 3
      %p101 = por %p99, %p100
      %p102 = scmp.ne.s32.totalorder %s93, %s94
      %p103 = scmp.eq.s32.totalorder %s29, 0
      %p104 = por %p102, %p103
      %p105 = scmp.ne.s32.totalorder %s93, %s94
      %p106 = scmp.eq.s32.totalorder %s30, 3
      %p107 = por %p105, %p106
      %p109 = scmp.ne.s32.totalorder %s94, %s108
      %p110 = scmp.eq.s32.totalorder %s30, 0
      %p111 = por %p109, %p110
      %s113 = sadd.s32 %s112, 1
      %p116 = scmp.eq.s32.totalorder %s24, 3
      %p117 = scmp.ne.s32.totalorder %s112, %s114
      %p118 = scmp.eq.s32.totalorder %s24, 0
      %p119 = por %p117, %p118
      %p120 = scmp.ne.s32.totalorder %s112, %s114
      %p121 = scmp.eq.s32.totalorder %s29, 3
      %p122 = por %p120, %p121
      %p123 = scmp.ne.s32.totalorder %s114, %s115
      %p124 = scmp.eq.s32.totalorder %s29, 0
      %p125 = por %p123, %p124
      %p126 = scmp.ne.s32.totalorder %s114, %s115
      %p127 = scmp.eq.s32.totalorder %s30, 3
      %p128 = por %p126, %p127
      %p130 = scmp.ne.s32.totalorder %s115, %s129
      %p131 = scmp.eq.s32.totalorder %s30, 0
      %p132 = por %p130, %p131
      %s134 = sadd.s32 %s133, 1
      %p137 = scmp.eq.s32.totalorder %s24, 3
      %p138 = scmp.ne.s32.totalorder %s133, %s135
      %p139 = scmp.eq.s32.totalorder %s24, 0
      %p140 = por %p138, %p139
      %p141 = scmp.ne.s32.totalorder %s133, %s135
      %p142 = scmp.eq.s32.totalorder %s29, 3
      %p143 = por %p141, %p142
      %p144 = scmp.ne.s32.totalorder %s135, %s136
      %p145 = scmp.eq.s32.totalorder %s29, 0
      %p146 = por %p144, %p145
      %p147 = scmp.ne.s32.totalorder %s135, %s136
      %p148 = scmp.eq.s32.totalorder %s30, 3
      %p149 = por %p147, %p148
      %p151 = scmp.ne.s32.totalorder %s136, %s150
      %p152 = scmp.eq.s32.totalorder %s30, 0
      %p153 = por %p151, %p152
      %s155 = sadd.s32 %s154, 1
      %p158 = scmp.eq.s32.totalorder %s24, 3
      %p159 = scmp.ne.s32.totalorder %s154, %s156
      %p160 = scmp.eq.s32.totalorder %s24, 0
      %p161 = por %p159, %p160
      %p162 = scmp.ne.s32.totalorder %s154, %s156
      %p163 = scmp.eq.s32.totalorder %s29, 3
      %p164 = por %p162, %p163
      %p165 = scmp.ne.s32.totalorder %s156, %s157
      %p166 = scmp.eq.s32.totalorder %s29, 0
      %p167 = por %p165, %p166
      %p168 = scmp.ne.s32.totalorder %s156, %s157
      %p169 = scmp.eq.s32.totalorder %s30, 3
      %p170 = por %p168, %p169
      %p172 = scmp.ne.s32.totalorder %s157, %s171
      %p173 = scmp.eq.s32.totalorder %s30, 0
      %p174 = por %p172, %p173
      %s176 = sadd.s32 %s175, 1
      %p179 = scmp.eq.s32.totalorder %s24, 3
      %p180 = scmp.ne.s32.totalorder %s175, %s177
      %p181 = scmp.eq.s32.totalorder %s24, 0
      %p182 = por %p180, %p181
      %p183 = scmp.ne.s32.totalorder %s175, %s177
      %p184 = scmp.eq.s32.totalorder %s29, 3
      %p185 = por %p183, %p184
      %p186 = scmp.ne.s32.totalorder %s177, %s178
      %p187 = scmp.eq.s32.totalorder %s29, 0
      %p188 = por %p186, %p187
      %p189 = scmp.ne.s32.totalorder %s177, %s178
      %p190 = scmp.eq.s32.totalorder %s30, 3
      %p191 = por %p189, %p190
      %p193 = scmp.ne.s32.totalorder %s178, %s192
      %p194 = scmp.eq.s32.totalorder %s30, 0
      %p195 = por %p193, %p194
      %s197 = sadd.s32 %s196, 1
      %p200 = scmp.eq.s32.totalorder %s24, 3
      %p201 = scmp.ne.s32.totalorder %s196, %s198
      %p202 = scmp.eq.s32.totalorder %s24, 0
      %p203 = por %p201, %p202
      %p204 = scmp.ne.s32.totalorder %s196, %s198
      %p205 = scmp.eq.s32.totalorder %s29, 3
      %p206 = por %p204, %p205
      %p207 = scmp.ne.s32.totalorder %s198, %s199
      %p208 = scmp.eq.s32.totalorder %s29, 0
      %p209 = por %p207, %p208
      %p210 = scmp.ne.s32.totalorder %s198, %s199
      %p211 = scmp.eq.s32.totalorder %s30, 3
      %p212 = por %p210, %p211
      %p214 = scmp.ne.s32.totalorder %s199, %s213
      %p215 = scmp.eq.s32.totalorder %s30, 0
      %p216 = por %p214, %p215
      %s218 = sadd.s32 %s217, 1
      %p221 = scmp.eq.s32.totalorder %s24, 3
      %p222 = scmp.ne.s32.totalorder %s217, %s219
      %p223 = scmp.eq.s32.totalorder %s24, 0
      %p224 = por %p222, %p223
      %p225 = scmp.ne.s32.totalorder %s217, %s219
      %p226 = scmp.eq.s32.totalorder %s29, 3
      %p227 = por %p225, %p226
      %p228 = scmp.ne.s32.totalorder %s219, %s220
      %p229 = scmp.eq.s32.totalorder %s29, 0
      %p230 = por %p228, %p229
      %p231 = scmp.ne.s32.totalorder %s219, %s220
      %p232 = scmp.eq.s32.totalorder %s30, 3
      %p233 = por %p231, %p232
      %p235 = scmp.ne.s32.totalorder %s220, %s234
      %p236 = scmp.eq.s32.totalorder %s30, 0
      %p237 = por %p235, %p236
      %s239 = sadd.s32 %s238, 1
      %p242 = scmp.eq.s32.totalorder %s24, 3
      %p243 = scmp.ne.s32.totalorder %s238, %s240
      %p244 = scmp.eq.s32.totalorder %s24, 0
      %p245 = por %p243, %p244
      %p246 = scmp.ne.s32.totalorder %s238, %s240
      %p247 = scmp.eq.s32.totalorder %s29, 3
      %p248 = por %p246, %p247
      %p249 = scmp.ne.s32.totalorder %s240, %s241
      %p250 = scmp.eq.s32.totalorder %s29, 0
      %p251 = por %p249, %p250
      %p252 = scmp.ne.s32.totalorder %s240, %s241
      %p253 = scmp.eq.s32.totalorder %s30, 3
      %p254 = por %p252, %p253
      %p256 = scmp.ne.s32.totalorder %s241, %s255
      %p257 = scmp.eq.s32.totalorder %s30, 0
      %p258 = por %p256, %p257
      %s260 = sadd.s32 %s259, 1
      %p263 = scmp.eq.s32.totalorder %s24, 3
      %p264 = scmp.ne.s32.totalorder %s259, %s261
      %p265 = scmp.eq.s32.totalorder %s24, 0
      %p266 = por %p264, %p265
      %p267 = scmp.ne.s32.totalorder %s259, %s261
      %p268 = scmp.eq.s32.totalorder %s29, 3
      %p269 = por %p267, %p268
      %p270 = scmp.ne.s32.totalorder %s261, %s262
      %p271 = scmp.eq.s32.totalorder %s29, 0
      %p272 = por %p270, %p271
      %p273 = scmp.ne.s32.totalorder %s261, %s262
      %p274 = scmp.eq.s32.totalorder %s30, 3
      %p275 = por %p273, %p274
      %p277 = scmp.ne.s32.totalorder %s262, %s276
      %p278 = scmp.eq.s32.totalorder %s30, 0
      %p279 = por %p277, %p278
      %s281 = sadd.s32 %s280, 1
      %p284 = scmp.eq.s32.totalorder %s24, 3
      %p285 = scmp.ne.s32.totalorder %s280, %s282
      %p286 = scmp.eq.s32.totalorder %s24, 0
      %p287 = por %p285, %p286
      %p288 = scmp.ne.s32.totalorder %s280, %s282
      %p289 = scmp.eq.s32.totalorder %s29, 3
      %p290 = por %p288, %p289
      %p291 = scmp.ne.s32.totalorder %s282, %s283
      %p292 = scmp.eq.s32.totalorder %s29, 0
      %p293 = por %p291, %p292
      %p294 = scmp.ne.s32.totalorder %s282, %s283
      %p295 = scmp.eq.s32.totalorder %s30, 3
      %p296 = por %p294, %p295
      %p298 = scmp.ne.s32.totalorder %s283, %s297
      %p299 = scmp.eq.s32.totalorder %s30, 0
      %p300 = por %p298, %p299
      %s302 = sadd.s32 %s301, 1
      %p305 = scmp.eq.s32.totalorder %s24, 3
      %p306 = scmp.ne.s32.totalorder %s301, %s303
      %p307 = scmp.eq.s32.totalorder %s24, 0
      %p308 = por %p306, %p307
      %p309 = scmp.ne.s32.totalorder %s301, %s303
      %p310 = scmp.eq.s32.totalorder %s29, 3
      %p311 = por %p309, %p310
      %p312 = scmp.ne.s32.totalorder %s303, %s304
      %p313 = scmp.eq.s32.totalorder %s29, 0
      %p314 = por %p312, %p313
      %p315 = scmp.ne.s32.totalorder %s303, %s304
      %p316 = scmp.eq.s32.totalorder %s30, 3
      %p317 = por %p315, %p316
      %p319 = scmp.ne.s32.totalorder %s304, %s318
      %p320 = scmp.eq.s32.totalorder %s30, 0
      %p321 = por %p319, %p320
      %s322 = ssub.s32 %s31, %s43
      %s323 = ssub.s32 %s32, %s39
      %s324 = sor.u32 %s322, %s323
      %p325 = scmp.eq.s32.totalorder %s324, 0
      %s327 = sadd.s32 %s326, 1
      %s328 = scalar_select %p325, %s326, %s327
      %p331 = pneg %p325
      %p332 = scmp.eq.s32.totalorder %s24, 3
      %p333 = por %p331, %p332
      %p334 = scmp.ne.s32.totalorder %s326, %s329
      %p335 = scmp.eq.s32.totalorder %s24, 0
      %p336 = por %p334, %p335
      %p337 = scmp.ne.s32.totalorder %s326, %s329
      %p338 = scmp.eq.s32.totalorder %s29, 3
      %p339 = por %p337, %p338
      %p340 = scmp.ne.s32.totalorder %s329, %s330
      %p341 = scmp.eq.s32.totalorder %s29, 0
      %p342 = por %p340, %p341
      %p343 = scmp.ne.s32.totalorder %s329, %s330
      %p344 = scmp.eq.s32.totalorder %s30, 3
      %p345 = por %p343, %p344
      %p347 = scmp.ne.s32.totalorder %s330, %s346
      %p348 = scmp.eq.s32.totalorder %s30, 0
      %p349 = por %p347, %p348
      %p350 = scmp.le.s32.totalorder 1, %s24
      %p351 = scmp.lt.s32.totalorder %s24, 5
      %p352 = pnand %p350, %p351
      %p353 = pneg %p352
      // Predicated region
      $region9: #{tpu_custom_call.1} parent=5 // pred_check
        _
      $region10: #{tpu_custom_call.1} parent=5 // pred_check_branch
        %355 = sbr.rel (%p352) target = $region12
      $region11: #{tpu_custom_call.1} parent=5 // pred_region
        %s356 = ssub.s32 %s24, 1
        // Predicated region
        $region13: #{tpu_custom_call.1} parent=11 // pred_check
          %p357 = pneg %p83
        $region14: #{tpu_custom_call.1} parent=11 // pred_check_branch
          %359 = sbr.rel (%p357) target = $region16
        $region15: #{tpu_custom_call.1} parent=11 // pred_region
          _
        $region16: #{tpu_custom_call.1} parent=11 // pred_fallthru
          _
        // Predicated region
        $region17: #{tpu_custom_call.1} parent=11 // pred_check
          %p360 = pneg %p104
        $region18: #{tpu_custom_call.1} parent=11 // pred_check_branch
          %362 = sbr.rel (%p360) target = $region20
        $region19: #{tpu_custom_call.1} parent=11 // pred_region
          _
        $region20: #{tpu_custom_call.1} parent=11 // pred_fallthru
          _
        // Predicated region
        $region21: #{tpu_custom_call.1} parent=11 // pred_check
          %p363 = pneg %p125
        $region22: #{tpu_custom_call.1} parent=11 // pred_check_branch
          %365 = sbr.rel (%p363) target = $region24
        $region23: #{tpu_custom_call.1} parent=11 // pred_region
          _
        $region24: #{tpu_custom_call.1} parent=11 // pred_fallthru
          _
        // Predicated region
        $region25: #{tpu_custom_call.1} parent=11 // pred_check
          %p366 = pneg %p146
        $region26: #{tpu_custom_call.1} parent=11 // pred_check_branch
          %368 = sbr.rel (%p366) target = $region28
        $region27: #{tpu_custom_call.1} parent=11 // pred_region
          _
        $region28: #{tpu_custom_call.1} parent=11 // pred_fallthru
          _
        // Predicated region
        $region29: #{tpu_custom_call.1} parent=11 // pred_check
          %p369 = pneg %p167
        $region30: #{tpu_custom_call.1} parent=11 // pred_check_branch
          %371 = sbr.rel (%p369) target = $region32
        $region31: #{tpu_custom_call.1} parent=11 // pred_region
          _
        $region32: #{tpu_custom_call.1} parent=11 // pred_fallthru
          _
        // Predicated region
        $region33: #{tpu_custom_call.1} parent=11 // pred_check
          %p372 = pneg %p188
        $region34: #{tpu_custom_call.1} parent=11 // pred_check_branch
          %374 = sbr.rel (%p372) target = $region36
        $region35: #{tpu_custom_call.1} parent=11 // pred_region
          %s376 = ssub.s32 16, 16
          %377 = vsyncadd [#allocation4], %s376
          %s379 = sshll.u32 [#allocation3], 4
          %s380 = int_to_ptr.vmem [resolvable:$true] %s379
          %382 = dma.hbm_to_vmem [thread:$0]  %s6, 16, %s380, [#allocation4]
        $region36: #{tpu_custom_call.1} parent=11 // pred_fallthru
          _
        // Predicated region
        $region37: #{tpu_custom_call.1} parent=11 // pred_check
          %p383 = pneg %p209
        $region38: #{tpu_custom_call.1} parent=11 // pred_check_branch
          %385 = sbr.rel (%p383) target = $region40
        $region39: #{tpu_custom_call.1} parent=11 // pred_region
          %s387 = ssub.s32 16, 16
          %388 = vsyncadd [#allocation7], %s387
          %s390 = sshll.u32 [#allocation6], 4
          %s391 = int_to_ptr.vmem [resolvable:$true] %s390
          %393 = dma.hbm_to_vmem [thread:$0]  %s7, 16, %s391, [#allocation7]
        $region40: #{tpu_custom_call.1} parent=11 // pred_fallthru
          _
        // Predicated region
        $region41: #{tpu_custom_call.1} parent=11 // pred_check
          %p394 = pneg %p230
        $region42: #{tpu_custom_call.1} parent=11 // pred_check_branch
          %396 = sbr.rel (%p394) target = $region44
        $region43: #{tpu_custom_call.1} parent=11 // pred_region
          %s398 = ssub.s32 16, 16
          %399 = vsyncadd [#allocation7], %s398
          %s401 = sshll.u32 [#allocation8], 4
          %s402 = int_to_ptr.vmem [resolvable:$true] %s401
          %404 = dma.hbm_to_vmem [thread:$0]  %s8, 16, %s402, [#allocation7]
        $region44: #{tpu_custom_call.1} parent=11 // pred_fallthru
          _
        // Predicated region
        $region45: #{tpu_custom_call.1} parent=11 // pred_check
          %p405 = pneg %p251
        $region46: #{tpu_custom_call.1} parent=11 // pred_check_branch
          %407 = sbr.rel (%p405) target = $region48
        $region47: #{tpu_custom_call.1} parent=11 // pred_region
          _
        $region48: #{tpu_custom_call.1} parent=11 // pred_fallthru
          _
        // Predicated region
        $region49: #{tpu_custom_call.1} parent=11 // pred_check
          %p408 = pneg %p272
        $region50: #{tpu_custom_call.1} parent=11 // pred_check_branch
          %410 = sbr.rel (%p408) target = $region52
        $region51: #{tpu_custom_call.1} parent=11 // pred_region
          _
        $region52: #{tpu_custom_call.1} parent=11 // pred_fallthru
          _
        // Predicated region
        $region53: #{tpu_custom_call.1} parent=11 // pred_check
          %p411 = pneg %p293
        $region54: #{tpu_custom_call.1} parent=11 // pred_check_branch
          %413 = sbr.rel (%p411) target = $region56
        $region55: #{tpu_custom_call.1} parent=11 // pred_region
          _
        $region56: #{tpu_custom_call.1} parent=11 // pred_fallthru
          _
        // Predicated region
        $region57: #{tpu_custom_call.1} parent=11 // pred_check
          %p414 = pneg %p314
        $region58: #{tpu_custom_call.1} parent=11 // pred_check_branch
          %416 = sbr.rel (%p414) target = $region60
        $region59: #{tpu_custom_call.1} parent=11 // pred_region
          _
        $region60: #{tpu_custom_call.1} parent=11 // pred_fallthru
          _
      $region12: #{tpu_custom_call.1} parent=5 // pred_fallthru
        _
      %p417 = scmp.lt.s32.totalorder %s24, 4
      // Predicated region
      $region61: #{tpu_custom_call.1} parent=5 // pred_check
        %p418 = pneg %p417
      $region62: #{tpu_custom_call.1} parent=5 // pred_check_branch
        %420 = sbr.rel (%p418) target = $region64
      $region63: #{tpu_custom_call.1} parent=5 // pred_region
        // Predicated region
        $region65: #{tpu_custom_call.1} parent=63 // pred_check
          %p421 = pneg %p56
        $region66: #{tpu_custom_call.1} parent=63 // pred_check_branch
          %423 = sbr.rel (%p421) target = $region68
        $region67: #{tpu_custom_call.1} parent=63 // pred_region
          %p424 = scmp.lt.s32.totalorder %s31, 1
          %s425 = scalar_select %p424, %s31, 1
          %s426 = smul.addr %s425, 2
          %s427 = smul.addr %s426, 8
          %s428 = scalar_lea.vmem %s0, %s427
        $region68: #{tpu_custom_call.1} parent=63 // pred_fallthru
          _
      $region64: #{tpu_custom_call.1} parent=5 // pred_fallthru
        _
      %p429 = scmp.le.s32.totalorder 1, %s24
      %p430 = scmp.lt.s32.totalorder %s24, 5
      %p431 = pnand %p429, %p430
      %p432 = pneg %p431
      // Predicated region
      $region69: #{tpu_custom_call.1} parent=5 // pred_check
        _
      $region70: #{tpu_custom_call.1} parent=5 // pred_check_branch
        %434 = sbr.rel (%p431) target = $region72
      $region71: #{tpu_custom_call.1} parent=5 // pred_region
        %s435 = ssub.s32 %s24, 1
        // Predicated region
        $region73: #{tpu_custom_call.1} parent=71 // pred_check
          %p436 = pneg %p188
        $region74: #{tpu_custom_call.1} parent=71 // pred_check_branch
          %438 = sbr.rel (%p436) target = $region76
        $region75: #{tpu_custom_call.1} parent=71 // pred_region
          %439 = dma.done [#allocation4], 16
        $region76: #{tpu_custom_call.1} parent=71 // pred_fallthru
          _
        // Predicated region
        $region77: #{tpu_custom_call.1} parent=71 // pred_check
          %p440 = pneg %p209
        $region78: #{tpu_custom_call.1} parent=71 // pred_check_branch
          %442 = sbr.rel (%p440) target = $region80
        $region79: #{tpu_custom_call.1} parent=71 // pred_region
          %443 = dma.done [#allocation7], 16
        $region80: #{tpu_custom_call.1} parent=71 // pred_fallthru
          _
        // Predicated region
        $region81: #{tpu_custom_call.1} parent=71 // pred_check
          %p444 = pneg %p230
        $region82: #{tpu_custom_call.1} parent=71 // pred_check_branch
          %446 = sbr.rel (%p444) target = $region84
        $region83: #{tpu_custom_call.1} parent=71 // pred_region
          %447 = dma.done [#allocation7], 16
        $region84: #{tpu_custom_call.1} parent=71 // pred_fallthru
          _
        %p448 = scmp.lt.s32.totalorder %s33, 1
        %s449 = scalar_select %p448, %s33, 1
        %s450 = smul.addr %s449, 2
        %s451 = smul.addr %s450, 8
        %s452 = scalar_lea.vmem %s0, %s451
        %p453 = pneg %p62
        %p454 = pneg %p59
        %p455 = pneg %p83
        %p456 = pneg %p80
        %p457 = pneg %p104
        %p458 = pneg %p101
        %p459 = pneg %p125
        %p460 = pneg %p122
        %p461 = pneg %p146
        %p462 = pneg %p143
        %p463 = pneg %p167
        %p464 = pneg %p164
        %p465 = pneg %p188
        %p466 = pneg %p185
        %p467 = pneg %p209
        %p468 = pneg %p206
        %p469 = pneg %p230
        %p470 = pneg %p227
        %p471 = pneg %p251
        %p472 = pneg %p248
        %p473 = pneg %p272
        %p474 = pneg %p269
        %p475 = pneg %p293
        %p476 = pneg %p290
        %p477 = pneg %p314
        %p478 = pneg %p311
        %p479 = pneg %p342
        %p480 = pneg %p339
        %s481 = sand.u32 %s329, 1
        %s482 = scalar_lea.sflag [#allocation5], %s481
        %s483 = sand.u32 %s329, 1
        %s484 = smul.addr %s483, 8
        %s485 = scalar_lea.vmem [#allocation9], %s484
        %p486 = scmp.lt.s32.totalorder %s33, 1
        %s487 = scalar_select %p486, %s33, 1
        %s488 = smul.addr %s487, 2
        %s489 = smul.addr %s488, 8
        %s490 = scalar_lea.vmem %s0, %s489
        %s492 = smul.u32 %s34, 8
        %v493 = vld [vmem:[%s490] sm:$0xff]
        %v494 = vld [vmem:[%s490 + $0x8] sm:$0xff]
        %s495 = scalar_lea.vmem %s490, %s492
        %v496 = vld [vmem:[%s495] sm:$0xff]
        %v497 = vld [vmem:[%s1] sm:$0x1]
        %v498 = vld [vmem:[%s2] sm:$0x1]
        %vm499 = vcmask 261120
        %v500 = vsel %vm499, %v493, 0.0
        %501 = vadd.xlane.f32.xlu0 %v500
        %v502 = vpop.xlane.xlu0 %501
        %v503 = vsel %vm499, %v494, 0.0
        %504 = vadd.xlane.f32.xlu0 %v503
        %v505 = vpop.xlane.xlu0 %504
        %v506 = vrcp.pop 32.0
        %v507 = vmul.f32 %v502, %v506
        %v508 = vmul.f32 %v505, %v506
        %v509 = vsub.f32 %v493, %v507
        %v510 = vsub.f32 %v494, %v508
        %v511 = vmul.f32 %v509, %v509
        %v512 = vmul.f32 %v510, %v510
        %v513 = vsel %vm499, %v511, 0.0
        %514 = vadd.xlane.f32.xlu0 %v513
        %v515 = vpop.xlane.xlu0 %514
        %v516 = vsel %vm499, %v512, 0.0
        %517 = vadd.xlane.f32.xlu0 %v516
        %v518 = vpop.xlane.xlu0 %517
        %v519 = vmul.f32 %v515, %v506
        %v520 = vmul.f32 %v518, %v506
        %v521 = vadd.f32 %v519, 1e-05
        %v522 = vadd.f32 %v520, 1e-05
        %v523 = vrsqrt.pop %v521
        %v524 = vrsqrt.pop %v522
        %v525 = vmul.f32 %v509, %v523
        %v526 = vmul.f32 %v510, %v524
        %v528 = vlaneseq
        %v529 = vshrl.u32 %v528, 7
        %v530 = vsub.s32 0, %v529
        %v531 = vrot.slane %v497, %v530
        %v533 = vmul.f32 %v525, %v531
        %v534 = vmul.f32 %v526, %v531
        %v536 = vlaneseq
        %v537 = vshrl.u32 %v536, 7
        %v538 = vsub.s32 0, %v537
        %v539 = vrot.slane %v498, %v538
        %v541 = vadd.f32 %v533, %v539
        %v542 = vadd.f32 %v534, %v539
        %v543 = vsel %vm499, %v496, 0.0
        %544 = vadd.xlane.f32.xlu0 %v543
        %v545 = vpop.xlane.xlu0 %544
        %v546 = vmul.f32 %v545, %v506
        %v547 = vsub.f32 %v496, %v546
        %v548 = vmul.f32 %v547, %v547
        %v549 = vsel %vm499, %v548, 0.0
        %550 = vadd.xlane.f32.xlu0 %v549
        %v551 = vpop.xlane.xlu0 %550
        %v552 = vmul.f32 %v551, %v506
        %v553 = vadd.f32 %v552, 1e-05
        %v554 = vrsqrt.pop %v553
        %v555 = vmul.f32 %v547, %v554
        %v556 = vmul.f32 %v555, %v531
        %v557 = vadd.f32 %v556, %v539
        %v558 = vpack.c.bf16 %v557, %v557
        %v559 = vld [vmem:[%s3] sm:$0xf]
        %v560 = vld [vmem:[%s3 + $0x4] sm:$0xf]
        %v561 = vld [vmem:[%s3 + $0x8] sm:$0xf]
        %v562 = vld [vmem:[%s3 + $0xc] sm:$0xf]
        %v567 = vunpack.c.l.b16 %v559
        %v568 = vunpack.c.l.b16 %v560
        %v569 = vunpack.c.l.b16 %v561
        %v570 = vunpack.c.l.b16 %v562
        %v571 = vpack.c.b16 %v568, %v567
        %v572 = vpack.c.b16 %v570, %v569
        %v576 = vsel %vm499, %v558, 0
        %578 = vmatprep.subr.bf16.mxu0 0
        %579 = vmatpush1.bf16.msra.mxu0 %v571
        %580 = vmatprep.subr.bf16.mxu0 0
        %581 = vmatpush1.bf16.msra.mxu0 %v572
        %582 = vmatprep.subr.bf16.mxu0 0
        %583 = vmatpush1.bf16.msra.mxu0 0
        %584 = vmatprep.subr.bf16.mxu0 0
        %585 = vmatpush1.bf16.msra.mxu0 0
        %586 = vmatprep.subr.bf16.mxu0 0
        %587 = vmatpush1.bf16.msra.mxu0 0
        %588 = vmatprep.subr.bf16.mxu0 0
        %589 = vmatpush1.bf16.msra.mxu0 0
        %590 = vmatprep.subr.bf16.mxu0 0
        %591 = vmatpush1.bf16.msra.mxu0 0
        %592 = vmatprep.subr.bf16.mxu0 0
        %593 = vmatpush1.bf16.msra.mxu0 0
        %594 = vmatprep.subr.bf16.mxu0 0
        %595 = vmatpush1.bf16.msra.mxu0 0
        %596 = vmatprep.subr.bf16.mxu0 0
        %597 = vmatpush1.bf16.msra.mxu0 0
        %598 = vmatprep.subr.bf16.mxu0 0
        %599 = vmatpush1.bf16.msra.mxu0 0
        %600 = vmatprep.subr.bf16.mxu0 0
        %601 = vmatpush1.bf16.msra.mxu0 0
        %602 = vmatprep.subr.bf16.mxu0 0
        %603 = vmatpush1.bf16.msra.mxu0 0
        %604 = vmatprep.subr.bf16.mxu0 0
        %605 = vmatpush1.bf16.msra.mxu0 0
        %606 = vmatprep.subr.bf16.mxu0 0
        %607 = vmatpush1.bf16.msra.mxu0 0
        %608 = vmatprep.subr.bf16.mxu0 0
        %609 = vmatpush1.bf16.msra.mxu0 0
        %610 = vmatprep.mubr.bf16.mxu0 0
        %611 = vmatmul.mubr.bf16.gmra.mrb[0].mxu0 %v576
        %v612 = vpop.f32.mrb[0].mxu0
        %v613 = vadd.f32 0.0, %v612
        %v614 = vpop.f32.mrb[0].mxu0
        %v615 = vpop.f32.mrb[0].mxu0
        %v616 = vpop.f32.mrb[0].mxu0
        %617 = vdwg.mxu0
        %v618 = vpack.c.bf16 %v613, %v613
        %v619 = vpack.c.bf16 %v542, %v541
        %v620 = vld [vmem:[%s4] sm:$0xf]
        %v621 = vld [vmem:[%s4 + $0x4] sm:$0xf]
        %v622 = vld [vmem:[%s4 + $0x8] sm:$0xf]
        %v623 = vld [vmem:[%s4 + $0xc] sm:$0xf]
        %v628 = vunpack.c.l.b16 %v620
        %v629 = vunpack.c.l.b16 %v621
        %v630 = vunpack.c.l.b16 %v622
        %v631 = vunpack.c.l.b16 %v623
        %v632 = vpack.c.b16 %v629, %v628
        %v633 = vpack.c.b16 %v631, %v630
        %v637 = vsel %vm499, %v619, 0
        %639 = vmatprep.subr.bf16.mxu0 0
        %640 = vmatpush1.bf16.msra.mxu0 %v632
        %641 = vmatprep.subr.bf16.mxu0 0
        %642 = vmatpush1.bf16.msra.mxu0 %v633
        %643 = vmatprep.subr.bf16.mxu0 0
        %644 = vmatpush1.bf16.msra.mxu0 0
        %645 = vmatprep.subr.bf16.mxu0 0
        %646 = vmatpush1.bf16.msra.mxu0 0
        %647 = vmatprep.subr.bf16.mxu0 0
        %648 = vmatpush1.bf16.msra.mxu0 0
        %649 = vmatprep.subr.bf16.mxu0 0
        %650 = vmatpush1.bf16.msra.mxu0 0
        %651 = vmatprep.subr.bf16.mxu0 0
        %652 = vmatpush1.bf16.msra.mxu0 0
        %653 = vmatprep.subr.bf16.mxu0 0
        %654 = vmatpush1.bf16.msra.mxu0 0
        %655 = vmatprep.subr.bf16.mxu0 0
        %656 = vmatpush1.bf16.msra.mxu0 0
        %657 = vmatprep.subr.bf16.mxu0 0
        %658 = vmatpush1.bf16.msra.mxu0 0
        %659 = vmatprep.subr.bf16.mxu0 0
        %660 = vmatpush1.bf16.msra.mxu0 0
        %661 = vmatprep.subr.bf16.mxu0 0
        %662 = vmatpush1.bf16.msra.mxu0 0
        %663 = vmatprep.subr.bf16.mxu0 0
        %664 = vmatpush1.bf16.msra.mxu0 0
        %665 = vmatprep.subr.bf16.mxu0 0
        %666 = vmatpush1.bf16.msra.mxu0 0
        %667 = vmatprep.subr.bf16.mxu0 0
        %668 = vmatpush1.bf16.msra.mxu0 0
        %669 = vmatprep.subr.bf16.mxu0 0
        %670 = vmatpush1.bf16.msra.mxu0 0
        %671 = vmatprep.mubr.bf16.mxu0 0
        %672 = vmatmul.mubr.bf16.gmra.mrb[0].mxu0 %v637
        %v673 = vpop.f32.mrb[0].mxu0
        %v674 = vadd.f32 0.0, %v673
        %v675 = vpop.f32.mrb[0].mxu0
        %v676 = vpop.f32.mrb[0].mxu0
        %v677 = vadd.f32 0.0, %v676
        %v678 = vpop.f32.mrb[0].mxu0
        %679 = vdwg.mxu0
        %v680 = vpack.c.bf16 %v677, %v674
        %vm681 = vcmask 64512
        %v683 = vsel %vm681, %v618, 0
        %v686 = vsel %vm681, %v680, 0
        %688 = vmatprep.subr.bf16.mxu0 0
        %689 = vmatpush1.bf16.xpose.msra.mxu0 %v686
        %690 = vmatprep.subr.bf16.mxu0 0
        %691 = vmatpush1.bf16.xpose.msra.mxu0 0
        %692 = vmatprep.subr.bf16.mxu0 0
        %693 = vmatpush1.bf16.xpose.msra.mxu0 0
        %694 = vmatprep.subr.bf16.mxu0 0
        %695 = vmatpush1.bf16.xpose.msra.mxu0 0
        %696 = vmatprep.subr.bf16.mxu0 0
        %697 = vmatpush1.bf16.xpose.msra.mxu0 0
        %698 = vmatprep.subr.bf16.mxu0 0
        %699 = vmatpush1.bf16.xpose.msra.mxu0 0
        %700 = vmatprep.subr.bf16.mxu0 0
        %701 = vmatpush1.bf16.xpose.msra.mxu0 0
        %702 = vmatprep.subr.bf16.mxu0 0
        %703 = vmatpush1.bf16.xpose.msra.mxu0 0
        %704 = vmatprep.subr.bf16.mxu0 0
        %705 = vmatpush1.bf16.xpose.msra.mxu0 0
        %706 = vmatprep.subr.bf16.mxu0 0
        %707 = vmatpush1.bf16.xpose.msra.mxu0 0
        %708 = vmatprep.subr.bf16.mxu0 0
        %709 = vmatpush1.bf16.xpose.msra.mxu0 0
        %710 = vmatprep.subr.bf16.mxu0 0
        %711 = vmatpush1.bf16.xpose.msra.mxu0 0
        %712 = vmatprep.subr.bf16.mxu0 0
        %713 = vmatpush1.bf16.xpose.msra.mxu0 0
        %714 = vmatprep.subr.bf16.mxu0 0
        %715 = vmatpush1.bf16.xpose.msra.mxu0 0
        %716 = vmatprep.subr.bf16.mxu0 0
        %717 = vmatpush1.bf16.xpose.msra.mxu0 0
        %718 = vmatprep.subr.bf16.mxu0 0
        %719 = vmatpush1.bf16.xpose.msra.mxu0 0
        %720 = vmatprep.mubr.bf16.mxu0 0
        %721 = vmatmul.mubr.bf16.gmra.mrb[0].mxu0 %v683
        %v722 = vpop.f32.mrb[0].mxu0
        %v723 = vadd.f32 0.0, %v722
        %v724 = vpop.f32.mrb[0].mxu0
        %v725 = vpop.f32.mrb[0].mxu0
        %v726 = vpop.f32.mrb[0].mxu0
        %727 = vdwg.mxu0
        %vm728 = vcmask 130048
        %v729 = vsel %vm728, %v723, -inf
        %730 = vmax.xlane.f32.xlu0 %v729
        %v731 = vpop.xlane.xlu0 %730
        %v732 = vsub.f32 %v723, %v731
        %v733 = vmul.f32 %v732, 1.442695
        %v734 = vpow.pop %v733
        %v735 = vsel %vm728, %v734, 0.0
        %736 = vadd.xlane.f32.xlu0 %v735
        %v737 = vpop.xlane.xlu0 %736
        %v738 = vrcp.pop %v737
        %v739 = vmul.f32 %v734, %v738
        %v740 = vpack.c.bf16 %v739, %v739
        %742 = vrot.lane.b32.xlu0 %v680, 96
        %v743 = vpop.permute.xlu0 %742
        %v746 = vsel %vm728, %v740, 0
        %748 = vmatprep.subr.bf16.mxu0 0
        %749 = vmatpush1.bf16.msra.mxu0 %v743
        %750 = vmatprep.subr.bf16.mxu0 0
        %751 = vmatpush1.bf16.msra.mxu0 0
        %752 = vmatprep.subr.bf16.mxu0 0
        %753 = vmatpush1.bf16.msra.mxu0 0
        %754 = vmatprep.subr.bf16.mxu0 0
        %755 = vmatpush1.bf16.msra.mxu0 0
        %756 = vmatprep.subr.bf16.mxu0 0
        %757 = vmatpush1.bf16.msra.mxu0 0
        %758 = vmatprep.subr.bf16.mxu0 0
        %759 = vmatpush1.bf16.msra.mxu0 0
        %760 = vmatprep.subr.bf16.mxu0 0
        %761 = vmatpush1.bf16.msra.mxu0 0
        %762 = vmatprep.subr.bf16.mxu0 0
        %763 = vmatpush1.bf16.msra.mxu0 0
        %764 = vmatprep.subr.bf16.mxu0 0
        %765 = vmatpush1.bf16.msra.mxu0 0
        %766 = vmatprep.subr.bf16.mxu0 0
        %767 = vmatpush1.bf16.msra.mxu0 0
        %768 = vmatprep.subr.bf16.mxu0 0
        %769 = vmatpush1.bf16.msra.mxu0 0
        %770 = vmatprep.subr.bf16.mxu0 0
        %771 = vmatpush1.bf16.msra.mxu0 0
        %772 = vmatprep.subr.bf16.mxu0 0
        %773 = vmatpush1.bf16.msra.mxu0 0
        %774 = vmatprep.subr.bf16.mxu0 0
        %775 = vmatpush1.bf16.msra.mxu0 0
        %776 = vmatprep.subr.bf16.mxu0 0
        %777 = vmatpush1.bf16.msra.mxu0 0
        %778 = vmatprep.subr.bf16.mxu0 0
        %779 = vmatpush1.bf16.msra.mxu0 0
        %780 = vmatprep.mubr.bf16.mxu0 0
        %781 = vmatmul.mubr.bf16.gmra.mrb[0].mxu0 %v746
        %v782 = vpop.f32.mrb[0].mxu0
        %v783 = vadd.f32 0.0, %v782
        %v784 = vpop.f32.mrb[0].mxu0
        %v785 = vpop.f32.mrb[0].mxu0
        %v786 = vpop.f32.mrb[0].mxu0
        %787 = vdwg.mxu0
        %788 = vst.msk [vmem:[#allocation2] sm:$0xff] %vm681, %v783
        %790 = vrot.lane.b32.xlu0 %v618, 120
        %v791 = vpop.permute.xlu0 %790
        %792 = vrot.lane.b32.xlu0 %v680, 120
        %v793 = vpop.permute.xlu0 %792
        %v795 = vsel %vm681, %v791, 0
        %v798 = vsel %vm681, %v793, 0
        %800 = vmatprep.subr.bf16.mxu0 0
        %801 = vmatpush1.bf16.xpose.msra.mxu0 %v798
        %802 = vmatprep.subr.bf16.mxu0 0
        %803 = vmatpush1.bf16.xpose.msra.mxu0 0
        %804 = vmatprep.subr.bf16.mxu0 0
        %805 = vmatpush1.bf16.xpose.msra.mxu0 0
        %806 = vmatprep.subr.bf16.mxu0 0
        %807 = vmatpush1.bf16.xpose.msra.mxu0 0
        %808 = vmatprep.subr.bf16.mxu0 0
        %809 = vmatpush1.bf16.xpose.msra.mxu0 0
        %810 = vmatprep.subr.bf16.mxu0 0
        %811 = vmatpush1.bf16.xpose.msra.mxu0 0
        %812 = vmatprep.subr.bf16.mxu0 0
        %813 = vmatpush1.bf16.xpose.msra.mxu0 0
        %814 = vmatprep.subr.bf16.mxu0 0
        %815 = vmatpush1.bf16.xpose.msra.mxu0 0
        %816 = vmatprep.subr.bf16.mxu0 0
        %817 = vmatpush1.bf16.xpose.msra.mxu0 0
        %818 = vmatprep.subr.bf16.mxu0 0
        %819 = vmatpush1.bf16.xpose.msra.mxu0 0
        %820 = vmatprep.subr.bf16.mxu0 0
        %821 = vmatpush1.bf16.xpose.msra.mxu0 0
        %822 = vmatprep.subr.bf16.mxu0 0
        %823 = vmatpush1.bf16.xpose.msra.mxu0 0
        %824 = vmatprep.subr.bf16.mxu0 0
        %825 = vmatpush1.bf16.xpose.msra.mxu0 0
        %826 = vmatprep.subr.bf16.mxu0 0
        %827 = vmatpush1.bf16.xpose.msra.mxu0 0
        %828 = vmatprep.subr.bf16.mxu0 0
        %829 = vmatpush1.bf16.xpose.msra.mxu0 0
        %830 = vmatprep.subr.bf16.mxu0 0
        %831 = vmatpush1.bf16.xpose.msra.mxu0 0
        %832 = vmatprep.mubr.bf16.mxu0 0
        %833 = vmatmul.mubr.bf16.gmra.mrb[0].mxu0 %v795
        %v834 = vpop.f32.mrb[0].mxu0
        %v835 = vadd.f32 0.0, %v834
        %v836 = vpop.f32.mrb[0].mxu0
        %v837 = vpop.f32.mrb[0].mxu0
        %v838 = vpop.f32.mrb[0].mxu0
        %839 = vdwg.mxu0
        %v840 = vsel %vm728, %v835, -inf
        %841 = vmax.xlane.f32.xlu0 %v840
        %v842 = vpop.xlane.xlu0 %841
        %v843 = vsub.f32 %v835, %v842
        %v844 = vmul.f32 %v843, 1.442695
        %v845 = vpow.pop %v844
        %v846 = vsel %vm728, %v845, 0.0
        %847 = vadd.xlane.f32.xlu0 %v846
        %v848 = vpop.xlane.xlu0 %847
        %v849 = vrcp.pop %v848
        %v850 = vmul.f32 %v845, %v849
        %v851 = vpack.c.bf16 %v850, %v850
        %852 = vrot.lane.b32.xlu0 %v680, 88
        %v853 = vpop.permute.xlu0 %852
        %v856 = vsel %vm728, %v851, 0
        %858 = vmatprep.subr.bf16.mxu0 0
        %859 = vmatpush1.bf16.msra.mxu0 %v853
        %860 = vmatprep.subr.bf16.mxu0 0
        %861 = vmatpush1.bf16.msra.mxu0 0
        %862 = vmatprep.subr.bf16.mxu0 0
        %863 = vmatpush1.bf16.msra.mxu0 0
        %864 = vmatprep.subr.bf16.mxu0 0
        %865 = vmatpush1.bf16.msra.mxu0 0
        %866 = vmatprep.subr.bf16.mxu0 0
        %867 = vmatpush1.bf16.msra.mxu0 0
        %868 = vmatprep.subr.bf16.mxu0 0
        %869 = vmatpush1.bf16.msra.mxu0 0
        %870 = vmatprep.subr.bf16.mxu0 0
        %871 = vmatpush1.bf16.msra.mxu0 0
        %872 = vmatprep.subr.bf16.mxu0 0
        %873 = vmatpush1.bf16.msra.mxu0 0
        %874 = vmatprep.subr.bf16.mxu0 0
        %875 = vmatpush1.bf16.msra.mxu0 0
        %876 = vmatprep.subr.bf16.mxu0 0
        %877 = vmatpush1.bf16.msra.mxu0 0
        %878 = vmatprep.subr.bf16.mxu0 0
        %879 = vmatpush1.bf16.msra.mxu0 0
        %880 = vmatprep.subr.bf16.mxu0 0
        %881 = vmatpush1.bf16.msra.mxu0 0
        %882 = vmatprep.subr.bf16.mxu0 0
        %883 = vmatpush1.bf16.msra.mxu0 0
        %884 = vmatprep.subr.bf16.mxu0 0
        %885 = vmatpush1.bf16.msra.mxu0 0
        %886 = vmatprep.subr.bf16.mxu0 0
        %887 = vmatpush1.bf16.msra.mxu0 0
        %888 = vmatprep.subr.bf16.mxu0 0
        %889 = vmatpush1.bf16.msra.mxu0 0
        %890 = vmatprep.mubr.bf16.mxu0 0
        %891 = vmatmul.mubr.bf16.gmra.mrb[0].mxu0 %v856
        %v892 = vpop.f32.mrb[0].mxu0
        %v893 = vadd.f32 0.0, %v892
        %v894 = vpop.f32.mrb[0].mxu0
        %v895 = vpop.f32.mrb[0].mxu0
        %v896 = vpop.f32.mrb[0].mxu0
        %897 = vdwg.mxu0
        %899 = vrot.lane.b32.xlu0 %v893, 8
        %v900 = vpop.permute.xlu0 %899
        %vm902 = vcmask 130112
        %903 = vst.msk [vmem:[#allocation2] sm:$0xff] %vm902, %v900
        %904 = vrot.lane.b32.xlu0 %v618, 112
        %v905 = vpop.permute.xlu0 %904
        %906 = vrot.lane.b32.xlu0 %v680, 112
        %v907 = vpop.permute.xlu0 %906
        %v909 = vsel %vm681, %v905, 0
        %v912 = vsel %vm681, %v907, 0
        %914 = vmatprep.subr.bf16.mxu0 0
        %915 = vmatpush1.bf16.xpose.msra.mxu0 %v912
        %916 = vmatprep.subr.bf16.mxu0 0
        %917 = vmatpush1.bf16.xpose.msra.mxu0 0
        %918 = vmatprep.subr.bf16.mxu0 0
        %919 = vmatpush1.bf16.xpose.msra.mxu0 0
        %920 = vmatprep.subr.bf16.mxu0 0
        %921 = vmatpush1.bf16.xpose.msra.mxu0 0
        %922 = vmatprep.subr.bf16.mxu0 0
        %923 = vmatpush1.bf16.xpose.msra.mxu0 0
        %924 = vmatprep.subr.bf16.mxu0 0
        %925 = vmatpush1.bf16.xpose.msra.mxu0 0
        %926 = vmatprep.subr.bf16.mxu0 0
        %927 = vmatpush1.bf16.xpose.msra.mxu0 0
        %928 = vmatprep.subr.bf16.mxu0 0
        %929 = vmatpush1.bf16.xpose.msra.mxu0 0
        %930 = vmatprep.subr.bf16.mxu0 0
        %931 = vmatpush1.bf16.xpose.msra.mxu0 0
        %932 = vmatprep.subr.bf16.mxu0 0
        %933 = vmatpush1.bf16.xpose.msra.mxu0 0
        %934 = vmatprep.subr.bf16.mxu0 0
        %935 = vmatpush1.bf16.xpose.msra.mxu0 0
        %936 = vmatprep.subr.bf16.mxu0 0
        %937 = vmatpush1.bf16.xpose.msra.mxu0 0
        %938 = vmatprep.subr.bf16.mxu0 0
        %939 = vmatpush1.bf16.xpose.msra.mxu0 0
        %940 = vmatprep.subr.bf16.mxu0 0
        %941 = vmatpush1.bf16.xpose.msra.mxu0 0
        %942 = vmatprep.subr.bf16.mxu0 0
        %943 = vmatpush1.bf16.xpose.msra.mxu0 0
        %944 = vmatprep.subr.bf16.mxu0 0
        %945 = vmatpush1.bf16.xpose.msra.mxu0 0
        %946 = vmatprep.mubr.bf16.mxu0 0
        %947 = vmatmul.mubr.bf16.gmra.mrb[0].mxu0 %v909
        %v948 = vpop.f32.mrb[0].mxu0
        %v949 = vadd.f32 0.0, %v948
        %v950 = vpop.f32.mrb[0].mxu0
        %v951 = vpop.f32.mrb[0].mxu0
        %v952 = vpop.f32.mrb[0].mxu0
        %953 = vdwg.mxu0
        %v954 = vsel %vm728, %v949, -inf
        %955 = vmax.xlane.f32.xlu0 %v954
        %v956 = vpop.xlane.xlu0 %955
        %v957 = vsub.f32 %v949, %v956
        %v958 = vmul.f32 %v957, 1.442695
        %v959 = vpow.pop %v958
        %v960 = vsel %vm728, %v959, 0.0
        %961 = vadd.xlane.f32.xlu0 %v960
        %v962 = vpop.xlane.xlu0 %961
        %v963 = vrcp.pop %v962
        %v964 = vmul.f32 %v959, %v963
        %v965 = vpack.c.bf16 %v964, %v964
        %966 = vrot.lane.b32.xlu0 %v680, 80
        %v967 = vpop.permute.xlu0 %966
        %v970 = vsel %vm728, %v965, 0
        %972 = vmatprep.subr.bf16.mxu0 0
        %973 = vmatpush1.bf16.msra.mxu0 %v967
        %974 = vmatprep.subr.bf16.mxu0 0
        %975 = vmatpush1.bf16.msra.mxu0 0
        %976 = vmatprep.subr.bf16.mxu0 0
        %977 = vmatpush1.bf16.msra.mxu0 0
        %978 = vmatprep.subr.bf16.mxu0 0
        %979 = vmatpush1.bf16.msra.mxu0 0
        %980 = vmatprep.subr.bf16.mxu0 0
        %981 = vmatpush1.bf16.msra.mxu0 0
        %982 = vmatprep.subr.bf16.mxu0 0
        %983 = vmatpush1.bf16.msra.mxu0 0
        %984 = vmatprep.subr.bf16.mxu0 0
        %985 = vmatpush1.bf16.msra.mxu0 0
        %986 = vmatprep.subr.bf16.mxu0 0
        %987 = vmatpush1.bf16.msra.mxu0 0
        %988 = vmatprep.subr.bf16.mxu0 0
        %989 = vmatpush1.bf16.msra.mxu0 0
        %990 = vmatprep.subr.bf16.mxu0 0
        %991 = vmatpush1.bf16.msra.mxu0 0
        %992 = vmatprep.subr.bf16.mxu0 0
        %993 = vmatpush1.bf16.msra.mxu0 0
        %994 = vmatprep.subr.bf16.mxu0 0
        %995 = vmatpush1.bf16.msra.mxu0 0
        %996 = vmatprep.subr.bf16.mxu0 0
        %997 = vmatpush1.bf16.msra.mxu0 0
        %998 = vmatprep.subr.bf16.mxu0 0
        %999 = vmatpush1.bf16.msra.mxu0 0
        %1000 = vmatprep.subr.bf16.mxu0 0
        %1001 = vmatpush1.bf16.msra.mxu0 0
        %1002 = vmatprep.subr.bf16.mxu0 0
        %1003 = vmatpush1.bf16.msra.mxu0 0
        %1004 = vmatprep.mubr.bf16.mxu0 0
        %1005 = vmatmul.mubr.bf16.gmra.mrb[0].mxu0 %v970
        %v1006 = vpop.f32.mrb[0].mxu0
        %v1007 = vadd.f32 0.0, %v1006
        %v1008 = vpop.f32.mrb[0].mxu0
        %v1009 = vpop.f32.mrb[0].mxu0
        %v1010 = vpop.f32.mrb[0].mxu0
        %1011 = vdwg.mxu0
        %1013 = vrot.lane.b32.xlu0 %v1007, 16
        %v1014 = vpop.permute.xlu0 %1013
        %vm1016 = vcmask 195712
        %1017 = vst.msk [vmem:[#allocation2] sm:$0xff] %vm1016, %v1014
        %1018 = vrot.lane.b32.xlu0 %v618, 104
        %v1019 = vpop.permute.xlu0 %1018
        %1020 = vrot.lane.b32.xlu0 %v680, 104
        %v1021 = vpop.permute.xlu0 %1020
        %v1023 = vsel %vm681, %v1019, 0
        %v1026 = vsel %vm681, %v1021, 0
        %1028 = vmatprep.subr.bf16.mxu0 0
        %1029 = vmatpush1.bf16.xpose.msra.mxu0 %v1026
        %1030 = vmatprep.subr.bf16.mxu0 0
        %1031 = vmatpush1.bf16.xpose.msra.mxu0 0
        %1032 = vmatprep.subr.bf16.mxu0 0
        %1033 = vmatpush1.bf16.xpose.msra.mxu0 0
        %1034 = vmatprep.subr.bf16.mxu0 0
        %1035 = vmatpush1.bf16.xpose.msra.mxu0 0
        %1036 = vmatprep.subr.bf16.mxu0 0
        %1037 = vmatpush1.bf16.xpose.msra.mxu0 0
        %1038 = vmatprep.subr.bf16.mxu0 0
        %1039 = vmatpush1.bf16.xpose.msra.mxu0 0
        %1040 = vmatprep.subr.bf16.mxu0 0
        %1041 = vmatpush1.bf16.xpose.msra.mxu0 0
        %1042 = vmatprep.subr.bf16.mxu0 0
        %1043 = vmatpush1.bf16.xpose.msra.mxu0 0
        %1044 = vmatprep.subr.bf16.mxu0 0
        %1045 = vmatpush1.bf16.xpose.msra.mxu0 0
        %1046 = vmatprep.subr.bf16.mxu0 0
        %1047 = vmatpush1.bf16.xpose.msra.mxu0 0
        %1048 = vmatprep.subr.bf16.mxu0 0
        %1049 = vmatpush1.bf16.xpose.msra.mxu0 0
        %1050 = vmatprep.subr.bf16.mxu0 0
        %1051 = vmatpush1.bf16.xpose.msra.mxu0 0
        %1052 = vmatprep.subr.bf16.mxu0 0
        %1053 = vmatpush1.bf16.xpose.msra.mxu0 0
        %1054 = vmatprep.subr.bf16.mxu0 0
        %1055 = vmatpush1.bf16.xpose.msra.mxu0 0
        %1056 = vmatprep.subr.bf16.mxu0 0
        %1057 = vmatpush1.bf16.xpose.msra.mxu0 0
        %1058 = vmatprep.subr.bf16.mxu0 0
        %1059 = vmatpush1.bf16.xpose.msra.mxu0 0
        %1060 = vmatprep.mubr.bf16.mxu0 0
        %1061 = vmatmul.mubr.bf16.gmra.mrb[0].mxu0 %v1023
        %v1062 = vpop.f32.mrb[0].mxu0
        %v1063 = vadd.f32 0.0, %v1062
        %v1064 = vpop.f32.mrb[0].mxu0
        %v1065 = vpop.f32.mrb[0].mxu0
        %v1066 = vpop.f32.mrb[0].mxu0
        %1067 = vdwg.mxu0
        %v1068 = vsel %vm728, %v1063, -inf
        %1069 = vmax.xlane.f32.xlu0 %v1068
        %v1070 = vpop.xlane.xlu0 %1069
        %v1071 = vsub.f32 %v1063, %v1070
        %v1072 = vmul.f32 %v1071, 1.442695
        %v1073 = vpow.pop %v1072
        %v1074 = vsel %vm728, %v1073, 0.0
        %1075 = vadd.xlane.f32.xlu0 %v1074
        %v1076 = vpop.xlane.xlu0 %1075
        %v1077 = vrcp.pop %v1076
        %v1078 = vmul.f32 %v1073, %v1077
        %v1079 = vpack.c.bf16 %v1078, %v1078
        %1080 = vrot.lane.b32.xlu0 %v680, 72
        %v1081 = vpop.permute.xlu0 %1080
        %v1084 = vsel %vm728, %v1079, 0
        %1086 = vmatprep.subr.bf16.mxu0 0
        %1087 = vmatpush1.bf16.msra.mxu0 %v1081
        %1088 = vmatprep.subr.bf16.mxu0 0
        %1089 = vmatpush1.bf16.msra.mxu0 0
        %1090 = vmatprep.subr.bf16.mxu0 0
        %1091 = vmatpush1.bf16.msra.mxu0 0
        %1092 = vmatprep.subr.bf16.mxu0 0
        %1093 = vmatpush1.bf16.msra.mxu0 0
        %1094 = vmatprep.subr.bf16.mxu0 0
        %1095 = vmatpush1.bf16.msra.mxu0 0
        %1096 = vmatprep.subr.bf16.mxu0 0
        %1097 = vmatpush1.bf16.msra.mxu0 0
        %1098 = vmatprep.subr.bf16.mxu0 0
        %1099 = vmatpush1.bf16.msra.mxu0 0
        %1100 = vmatprep.subr.bf16.mxu0 0
        %1101 = vmatpush1.bf16.msra.mxu0 0
        %1102 = vmatprep.subr.bf16.mxu0 0
        %1103 = vmatpush1.bf16.msra.mxu0 0
        %1104 = vmatprep.subr.bf16.mxu0 0
        %1105 = vmatpush1.bf16.msra.mxu0 0
        %1106 = vmatprep.subr.bf16.mxu0 0
        %1107 = vmatpush1.bf16.msra.mxu0 0
        %1108 = vmatprep.subr.bf16.mxu0 0
        %1109 = vmatpush1.bf16.msra.mxu0 0
        %1110 = vmatprep.subr.bf16.mxu0 0
        %1111 = vmatpush1.bf16.msra.mxu0 0
        %1112 = vmatprep.subr.bf16.mxu0 0
        %1113 = vmatpush1.bf16.msra.mxu0 0
        %1114 = vmatprep.subr.bf16.mxu0 0
        %1115 = vmatpush1.bf16.msra.mxu0 0
        %1116 = vmatprep.subr.bf16.mxu0 0
        %1117 = vmatpush1.bf16.msra.mxu0 0
        %1118 = vmatprep.mubr.bf16.mxu0 0
        %1119 = vmatmul.mubr.bf16.gmra.mrb[0].mxu0 %v1084
        %v1120 = vpop.f32.mrb[0].mxu0
        %v1121 = vadd.f32 0.0, %v1120
        %v1122 = vpop.f32.mrb[0].mxu0
        %v1123 = vpop.f32.mrb[0].mxu0
        %v1124 = vpop.f32.mrb[0].mxu0
        %1125 = vdwg.mxu0
        %1127 = vrot.lane.b32.xlu0 %v1121, 24
        %v1128 = vpop.permute.xlu0 %1127
        %vm1130 = vcmask 261312
        %1131 = vst.msk [vmem:[#allocation2] sm:$0xff] %vm1130, %v1128
        %v1132 = vld [vmem:[#allocation2] sm:$0xff]
        %v1133 = vpack.c.bf16 %v1132, %v1132
        %v1134 = vld [vmem:[%s5] sm:$0xf]
        %v1135 = vld [vmem:[%s5 + $0x4] sm:$0xf]
        %v1136 = vld [vmem:[%s5 + $0x8] sm:$0xf]
        %v1137 = vld [vmem:[%s5 + $0xc] sm:$0xf]
        %v1142 = vunpack.c.l.b16 %v1134
        %v1143 = vunpack.c.l.b16 %v1135
        %v1144 = vunpack.c.l.b16 %v1136
        %v1145 = vunpack.c.l.b16 %v1137
        %v1146 = vpack.c.b16 %v1143, %v1142
        %v1147 = vpack.c.b16 %v1145, %v1144
        %v1151 = vsel %vm499, %v1133, 0
        %1153 = vmatprep.subr.bf16.mxu0 0
        %1154 = vmatpush1.bf16.msra.mxu0 %v1146
        %1155 = vmatprep.subr.bf16.mxu0 0
        %1156 = vmatpush1.bf16.msra.mxu0 %v1147
        %1157 = vmatprep.subr.bf16.mxu0 0
        %1158 = vmatpush1.bf16.msra.mxu0 0
        %1159 = vmatprep.subr.bf16.mxu0 0
        %1160 = vmatpush1.bf16.msra.mxu0 0
        %1161 = vmatprep.subr.bf16.mxu0 0
        %1162 = vmatpush1.bf16.msra.mxu0 0
        %1163 = vmatprep.subr.bf16.mxu0 0
        %1164 = vmatpush1.bf16.msra.mxu0 0
        %1165 = vmatprep.subr.bf16.mxu0 0
        %1166 = vmatpush1.bf16.msra.mxu0 0
        %1167 = vmatprep.subr.bf16.mxu0 0
        %1168 = vmatpush1.bf16.msra.mxu0 0
        %1169 = vmatprep.subr.bf16.mxu0 0
        %1170 = vmatpush1.bf16.msra.mxu0 0
        %1171 = vmatprep.subr.bf16.mxu0 0
        %1172 = vmatpush1.bf16.msra.mxu0 0
        %1173 = vmatprep.subr.bf16.mxu0 0
        %1174 = vmatpush1.bf16.msra.mxu0 0
        %1175 = vmatprep.subr.bf16.mxu0 0
        %1176 = vmatpush1.bf16.msra.mxu0 0
        %1177 = vmatprep.subr.bf16.mxu0 0
        %1178 = vmatpush1.bf16.msra.mxu0 0
        %1179 = vmatprep.subr.bf16.mxu0 0
        %1180 = vmatpush1.bf16.msra.mxu0 0
        %1181 = vmatprep.subr.bf16.mxu0 0
        %1182 = vmatpush1.bf16.msra.mxu0 0
        %1183 = vmatprep.subr.bf16.mxu0 0
        %1184 = vmatpush1.bf16.msra.mxu0 0
        %1185 = vmatprep.mubr.bf16.mxu0 0
        %1186 = vmatmul.mubr.bf16.gmra.mrb[0].mxu0 %v1151
        %v1187 = vpop.f32.mrb[0].mxu0
        %v1188 = vadd.f32 0.0, %v1187
        %v1189 = vpop.f32.mrb[0].mxu0
        %v1190 = vpop.f32.mrb[0].mxu0
        %v1191 = vpop.f32.mrb[0].mxu0
        %1192 = vdwg.mxu0
        %v1193 = vadd.f32 %v496, %v1188
        %v1194 = vld [vmem:[#allocation3] sm:$0x1]
        %v1196 = vlaneseq
        %v1197 = vshrl.u32 %v1196, 7
        %v1198 = vsub.s32 0, %v1197
        %v1199 = vrot.slane %v1194, %v1198
        %v1201 = vadd.f32 %v1193, %v1199
        %v1202 = vld [vmem:[#allocation6] sm:$0x1]
        %v1203 = vld [vmem:[#allocation8] sm:$0x1]
        %v1204 = vsel %vm499, %v1201, 0.0
        %1205 = vadd.xlane.f32.xlu0 %v1204
        %v1206 = vpop.xlane.xlu0 %1205
        %v1207 = vmul.f32 %v1206, %v506
        %v1208 = vsub.f32 %v1201, %v1207
        %v1209 = vmul.f32 %v1208, %v1208
        %v1210 = vsel %vm499, %v1209, 0.0
        %1211 = vadd.xlane.f32.xlu0 %v1210
        %v1212 = vpop.xlane.xlu0 %1211
        %v1213 = vmul.f32 %v1212, %v506
        %v1214 = vadd.f32 %v1213, 1e-05
        %v1215 = vrsqrt.pop %v1214
        %v1216 = vmul.f32 %v1208, %v1215
        %v1218 = vlaneseq
        %v1219 = vshrl.u32 %v1218, 7
        %v1220 = vsub.s32 0, %v1219
        %v1221 = vrot.slane %v1202, %v1220
        %v1223 = vmul.f32 %v1216, %v1221
        %v1225 = vlaneseq
        %v1226 = vshrl.u32 %v1225, 7
        %v1227 = vsub.s32 0, %v1226
        %v1228 = vrot.slane %v1203, %v1227
        %v1230 = vadd.f32 %v1223, %v1228
        %v1231 = vpack.c.bf16 %v1230, %v1230
        %v1232 = vld [vmem:[%s9] sm:$0xf]
        %v1233 = vld [vmem:[%s9 + $0x4] sm:$0xf]
        %v1234 = vld [vmem:[%s9 + $0x8] sm:$0xf]
        %v1235 = vld [vmem:[%s9 + $0xc] sm:$0xf]
        %v1236 = vld [vmem:[%s10] sm:$0x1]
        %v1238 = vlaneseq
        %v1239 = vshrl.u32 %v1238, 7
        %v1240 = vsub.s32 0, %v1239
        %v1241 = vrot.slane %v1236, %v1240
        %v1247 = vunpack.c.l.b16 %v1232
        %v1248 = vunpack.c.l.b16 %v1233
        %v1249 = vunpack.c.l.b16 %v1234
        %v1250 = vunpack.c.l.b16 %v1235
        %v1251 = vpack.c.b16 %v1248, %v1247
        %v1252 = vpack.c.b16 %v1250, %v1249
        %v1256 = vsel %vm499, %v1231, 0
        %1258 = vmatprep.subr.bf16.mxu0 0
        %1259 = vmatpush1.bf16.msra.mxu0 %v1251
        %1260 = vmatprep.subr.bf16.mxu0 0
        %1261 = vmatpush1.bf16.msra.mxu0 %v1252
        %1262 = vmatprep.subr.bf16.mxu0 0
        %1263 = vmatpush1.bf16.msra.mxu0 0
        %1264 = vmatprep.subr.bf16.mxu0 0
        %1265 = vmatpush1.bf16.msra.mxu0 0
        %1266 = vmatprep.subr.bf16.mxu0 0
        %1267 = vmatpush1.bf16.msra.mxu0 0
        %1268 = vmatprep.subr.bf16.mxu0 0
        %1269 = vmatpush1.bf16.msra.mxu0 0
        %1270 = vmatprep.subr.bf16.mxu0 0
        %1271 = vmatpush1.bf16.msra.mxu0 0
        %1272 = vmatprep.subr.bf16.mxu0 0
        %1273 = vmatpush1.bf16.msra.mxu0 0
        %1274 = vmatprep.subr.bf16.mxu0 0
        %1275 = vmatpush1.bf16.msra.mxu0 0
        %1276 = vmatprep.subr.bf16.mxu0 0
        %1277 = vmatpush1.bf16.msra.mxu0 0
        %1278 = vmatprep.subr.bf16.mxu0 0
        %1279 = vmatpush1.bf16.msra.mxu0 0
        %1280 = vmatprep.subr.bf16.mxu0 0
        %1281 = vmatpush1.bf16.msra.mxu0 0
        %1282 = vmatprep.subr.bf16.mxu0 0
        %1283 = vmatpush1.bf16.msra.mxu0 0
        %1284 = vmatprep.subr.bf16.mxu0 0
        %1285 = vmatpush1.bf16.msra.mxu0 0
        %1286 = vmatprep.subr.bf16.mxu0 0
        %1287 = vmatpush1.bf16.msra.mxu0 0
        %1288 = vmatprep.subr.bf16.mxu0 0
        %1289 = vmatpush1.bf16.msra.mxu0 0
        %1290 = vmatprep.mubr.bf16.mxu0 0
        %1291 = vmatmul.mubr.bf16.gmra.mrb[0].mxu0 %v1256
        %v1292 = vpop.f32.mrb[0].mxu0
        %v1293 = vadd.f32 %v1241, %v1292
        %v1294 = vpop.f32.mrb[0].mxu0
        %v1295 = vpop.f32.mrb[0].mxu0
        %v1296 = vpop.f32.mrb[0].mxu0
        %1297 = vdwg.mxu0
        %v1298 = vmul.f32 %v1293, 0.70710677
        %vm1299 = vcmp.ge.f32.partialorder %v1298, 0.0
        %v1300 = vsel %vm1299, 1.0, -1.0
        %v1301 = vand.u32 2147483647, %v1298
        %v1302 = vmul.f32 %v1301, 0.3275911
        %v1303 = vadd.f32 %v1302, 1.0
        %v1304 = vrcp.pop %v1303
        %v1305 = vmul.f32 1.0, %v1304
        %v1306 = vmul.f32 %v1305, 1.0614054
        %v1307 = vadd.f32 %v1306, -1.4531521
        %v1308 = vmul.f32 %v1307, %v1305
        %v1309 = vadd.f32 %v1308, 1.4214138
        %v1310 = vmul.f32 %v1309, %v1305
        %v1311 = vadd.f32 %v1310, -0.28449672
        %v1312 = vmul.f32 %v1311, %v1305
        %v1313 = vadd.f32 %v1312, 0.2548296
        %v1314 = vmul.f32 %v1313, %v1305
        %v1315 = vsub.f32 0.0, %v1301
        %v1316 = vmul.f32 %v1315, %v1301
        %v1317 = vmul.f32 %v1316, 1.442695
        %v1318 = vpow.pop %v1317
        %v1319 = vmul.f32 %v1314, %v1318
        %v1320 = vsub.f32 1.0, %v1319
        %v1321 = vmul.f32 %v1300, %v1320
        %v1322 = vmul.f32 %v1293, 0.5
        %v1323 = vadd.f32 %v1321, 1.0
        %v1324 = vmul.f32 %v1322, %v1323
        %v1325 = vpack.c.bf16 %v1324, %v1324
        %v1326 = vld [vmem:[%s11] sm:$0xf]
        %v1327 = vld [vmem:[%s11 + $0x4] sm:$0xf]
        %v1328 = vld [vmem:[%s11 + $0x8] sm:$0xf]
        %v1329 = vld [vmem:[%s11 + $0xc] sm:$0xf]
        %v1330 = vld [vmem:[%s11 + $0x10] sm:$0xf]
        %v1331 = vld [vmem:[%s11 + $0x14] sm:$0xf]
        %v1332 = vld [vmem:[%s11 + $0x18] sm:$0xf]
        %v1333 = vld [vmem:[%s11 + $0x1c] sm:$0xf]
        %v1334 = vld [vmem:[%s11 + $0x20] sm:$0xf]
        %v1335 = vld [vmem:[%s11 + $0x24] sm:$0xf]
        %v1336 = vld [vmem:[%s11 + $0x28] sm:$0xf]
        %v1337 = vld [vmem:[%s11 + $0x2c] sm:$0xf]
        %v1338 = vld [vmem:[%s11 + $0x30] sm:$0xf]
        %v1339 = vld [vmem:[%s11 + $0x34] sm:$0xf]
        %v1340 = vld [vmem:[%s11 + $0x38] sm:$0xf]
        %v1341 = vld [vmem:[%s11 + $0x3c] sm:$0xf]
        %v1342 = vld [vmem:[%s12] sm:$0x1]
        %v1344 = vlaneseq
        %v1345 = vshrl.u32 %v1344, 7
        %v1346 = vsub.s32 0, %v1345
        %v1347 = vrot.slane %v1342, %v1346
        %v1365 = vunpack.c.l.b16 %v1326
        %v1366 = vunpack.c.l.b16 %v1327
        %v1367 = vunpack.c.l.b16 %v1328
        %v1368 = vunpack.c.l.b16 %v1329
        %v1369 = vunpack.c.l.b16 %v1330
        %v1370 = vunpack.c.l.b16 %v1331
        %v1371 = vunpack.c.l.b16 %v1332
        %v1372 = vunpack.c.l.b16 %v1333
        %v1373 = vunpack.c.l.b16 %v1334
        %v1374 = vunpack.c.l.b16 %v1335
        %v1375 = vunpack.c.l.b16 %v1336
        %v1376 = vunpack.c.l.b16 %v1337
        %v1377 = vunpack.c.l.b16 %v1338
        %v1378 = vunpack.c.l.b16 %v1339
        %v1379 = vunpack.c.l.b16 %v1340
        %v1380 = vunpack.c.l.b16 %v1341
        %v1381 = vpack.c.b16 %v1366, %v1365
        %v1382 = vpack.c.b16 %v1368, %v1367
        %v1383 = vpack.c.b16 %v1370, %v1369
        %v1384 = vpack.c.b16 %v1372, %v1371
        %v1385 = vpack.c.b16 %v1374, %v1373
        %v1386 = vpack.c.b16 %v1376, %v1375
        %v1387 = vpack.c.b16 %v1378, %v1377
        %v1388 = vpack.c.b16 %v1380, %v1379
        %1397 = vmatprep.subr.bf16.mxu0 0
        %1398 = vmatpush1.bf16.msra.mxu0 %v1381
        %1399 = vmatprep.subr.bf16.mxu0 0
        %1400 = vmatpush1.bf16.msra.mxu0 %v1382
        %1401 = vmatprep.subr.bf16.mxu0 0
        %1402 = vmatpush1.bf16.msra.mxu0 %v1383
        %1403 = vmatprep.subr.bf16.mxu0 0
        %1404 = vmatpush1.bf16.msra.mxu0 %v1384
        %1405 = vmatprep.subr.bf16.mxu0 0
        %1406 = vmatpush1.bf16.msra.mxu0 %v1385
        %1407 = vmatprep.subr.bf16.mxu0 0
        %1408 = vmatpush1.bf16.msra.mxu0 %v1386
        %1409 = vmatprep.subr.bf16.mxu0 0
        %1410 = vmatpush1.bf16.msra.mxu0 %v1387
        %1411 = vmatprep.subr.bf16.mxu0 0
        %1412 = vmatpush1.bf16.msra.mxu0 %v1388
        %1413 = vmatprep.subr.bf16.mxu0 0
        %1414 = vmatpush1.bf16.msra.mxu0 0
        %1415 = vmatprep.subr.bf16.mxu0 0
        %1416 = vmatpush1.bf16.msra.mxu0 0
        %1417 = vmatprep.subr.bf16.mxu0 0
        %1418 = vmatpush1.bf16.msra.mxu0 0
        %1419 = vmatprep.subr.bf16.mxu0 0
        %1420 = vmatpush1.bf16.msra.mxu0 0
        %1421 = vmatprep.subr.bf16.mxu0 0
        %1422 = vmatpush1.bf16.msra.mxu0 0
        %1423 = vmatprep.subr.bf16.mxu0 0
        %1424 = vmatpush1.bf16.msra.mxu0 0
        %1425 = vmatprep.subr.bf16.mxu0 0
        %1426 = vmatpush1.bf16.msra.mxu0 0
        %1427 = vmatprep.subr.bf16.mxu0 0
        %1428 = vmatpush1.bf16.msra.mxu0 0
        %1429 = vmatprep.mubr.bf16.mxu0 0
        %1430 = vmatmul.mubr.bf16.gmra.mrb[0].mxu0 %v1325
        %v1431 = vpop.f32.mrb[0].mxu0
        %v1432 = vadd.f32 %v1347, %v1431
        %v1433 = vpop.f32.mrb[0].mxu0
        %v1434 = vpop.f32.mrb[0].mxu0
        %v1435 = vpop.f32.mrb[0].mxu0
        %1436 = vdwg.mxu0
        %v1437 = vadd.f32 %v1201, %v1432
        %1438 = vst.msk [vmem:[%s485] sm:$0xff] %vm499, %v1437
        %s1439 = sand.u32 %s329, 1
        %s1440 = scalar_lea.sflag [#allocation5], %s1439
        %s1441 = sand.u32 %s329, 1
        %s1442 = smul.addr %s1441, 8
        %s1443 = scalar_lea.vmem [#allocation9], %s1442
        // Predicated region
        $region85: #{tpu_custom_call.1} parent=71 // pred_check
          %p1444 = pneg %p339
        $region86: #{tpu_custom_call.1} parent=71 // pred_check_branch
          %1446 = sbr.rel (%p1444) target = $region88
        $region87: #{tpu_custom_call.1} parent=71 // pred_region
          %s1448 = ssub.s32 128, 128
          %1449 = vsyncadd %s1440, %s1448
          %s1450 = smul.addr %s33, 2
          %s1451 = sadd.s32 %s34, %s1450
          %s1452 = smul.addr %s1451, 128
          %s1453 = scalar_lea.hbm %s13, %s1452
          %s1455 = sshll.u32 %s1443, 4
          %s1456 = int_to_ptr.vmem [resolvable:$true] %s1455
          %1458 = dma.vmem_to_hbm [thread:$0]  %s1456, 128, %s1453, %s1440
        $region88: #{tpu_custom_call.1} parent=71 // pred_fallthru
          _
      $region72: #{tpu_custom_call.1} parent=5 // pred_fallthru
        _
      %p1459 = scmp.le.s32.totalorder 2, %s24
      // Predicated region
      $region89: #{tpu_custom_call.1} parent=5 // pred_check
        %p1460 = pneg %p1459
      $region90: #{tpu_custom_call.1} parent=5 // pred_check_branch
        %1462 = sbr.rel (%p1460) target = $region92
      $region91: #{tpu_custom_call.1} parent=5 // pred_region
        %s1463 = ssub.s32 %s24, 2
        // Predicated region
        $region93: #{tpu_custom_call.1} parent=91 // pred_check
          %p1464 = pneg %p345
        $region94: #{tpu_custom_call.1} parent=91 // pred_check_branch
          %1466 = sbr.rel (%p1464) target = $region96
        $region95: #{tpu_custom_call.1} parent=91 // pred_region
          %s1467 = sand.u32 %s330, 1
          %s1468 = scalar_lea.sflag [#allocation5], %s1467
          %s1469 = sand.u32 %s330, 1
          %s1470 = smul.addr %s1469, 8
          %s1471 = scalar_lea.vmem [#allocation9], %s1470
          %1472 = dma.done %s1468, 128
        $region96: #{tpu_custom_call.1} parent=91 // pred_fallthru
          _
      $region92: #{tpu_custom_call.1} parent=5 // pred_fallthru
        _
    $region6: #{tpu_custom_call.1} parent=1 // loop_footer
      %s28 = sadd.s32 1, %s24
    $region7: #{tpu_custom_call.1} parent=1 // loop_footer_branch
      %23 = sbr.rel target = $region3
    $region8: #{tpu_custom_call.1} parent=1 // loop_exit
      _
    %1473 = vsyncpa [#allocation4], 1
    %s1474 = scalar_lea.sflag [#allocation4], 1
    %1475 = vsyncpa %s1474, 1
    %1476 = vsyncpa [#allocation7], 1
    %1477 = vsyncpa [#allocation5], 1
    %s1478 = scalar_lea.sflag [#allocation5], 1
    %1479 = vsyncpa %s1478, 1

</llo_original>
